<compile_context>
chip_gen: v7x
topology: tpu7x:2x2x1
jax: 0.10.0
libtpu: 0.0.40
codegen_flags: <defaults>
</compile_context>

<pallas_src>
import math
import functools

import jax
import jax.numpy as jnp
import numpy as np
from jax import lax
from jax.experimental import pallas as pl
from jax.experimental.pallas import tpu as pltpu


def _layernorm(y, gamma, beta, eps=1e-5):
    mu = jnp.mean(y, axis=-1, keepdims=True)
    var = jnp.mean(jnp.square(y - mu), axis=-1, keepdims=True)
    return (y - mu) * lax.rsqrt(var + eps) * gamma + beta


def mrt_kernel(x_ref, mask_ref, wqkv_ref, wo_ref, w1_ref, w2_ref, vecs_ref,
               o_ref, *, num_heads, compute_dtype):
    """One grid step: `batch_block` batch elements folded into an (R, D) block.

    vecs_ref rows: 0 bq, 1 bk, 2 bv, 3 bo, 4 ln1_g, 5 ln1_b, 6 ffn_b1,
                   7 ffn_b2, 8 ln2_g, 9 ln2_b.
    """
    R, D = x_ref.shape
    hd = D // num_heads
    scale = 1.0 / math.sqrt(hd)
    cd = compute_dtype

    x = x_ref[...]                                        # (R, D) f32

    # --- fused QKV projection: one MXU pass with a lane-dense 3D-wide RHS ---
    qkv = jnp.dot(x.astype(cd), wqkv_ref[...].astype(cd),
                  preferred_element_type=jnp.float32)     # (R, 3D) f32
    q = qkv[:, 0 * D:1 * D] + vecs_ref[0:1, :]            # + bq  (broadcast (1,D))
    k = qkv[:, 1 * D:2 * D] + vecs_ref[1:2, :]            # + bk
    v = qkv[:, 2 * D:3 * D] + vecs_ref[2:3, :]            # + bv

    mask = mask_ref[...]                                  # (R, R) block-diag additive

    # --- per-head attention: no transpose, no concat; accumulate into Wo ----
    acc = jnp.zeros((R, D), jnp.float32)
    for h in range(num_heads):                            # static unroll (H small)
        sl = slice(h * hd, (h + 1) * hd)
        qh = q[:, sl].astype(cd)                          # (R, hd)
        kh = k[:, sl].astype(cd)
        vh = v[:, sl].astype(cd)
        # q @ k^T expressed as dot_general contracting the last dims of both
        # operands, so no transposed value is ever materialized (MXU-native).
        s = lax.dot_general(qh, kh, (((1,), (1,)), ((), ())),
                            preferred_element_type=jnp.float32)   # (R, R)
        s = s * scale + mask
        s = s - jnp.max(s, axis=-1, keepdims=True)
        p = jnp.exp(s)
        denom = jnp.sum(p, axis=-1, keepdims=True)
        # EUP approximate reciprocal + one Newton step => full f32 accuracy
        # while keeping the divide off the VALU critical path.
        r = pl.reciprocal(denom, approx=True)
        r = r * (2.0 - denom * r)
        p = p * r
        oh = jnp.dot(p.astype(cd), vh,
                     preferred_element_type=jnp.float32)          # (R, hd)
        acc = acc + jnp.dot(oh.astype(cd), wo_ref[sl, :].astype(cd),
                            preferred_element_type=jnp.float32)   # (R, D)
    attn = acc + vecs_ref[3:4, :]                                  # + bo

    # --- residual + LayerNorm 1 (f32 VPU/EUP math) ---------------------------
    x1 = _layernorm(x + attn, vecs_ref[4:5, :], vecs_ref[5:6, :])

    # --- FFN: Linear -> ReLU -> Linear ---------------------------------------
    h1 = jnp.dot(x1.astype(cd), w1_ref[...].astype(cd),
                 preferred_element_type=jnp.float32) + vecs_ref[6:7, :]
    h1 = jnp.maximum(h1, 0.0)
    f = jnp.dot(h1.astype(cd), w2_ref[...].astype(cd),
                preferred_element_type=jnp.float32) + vecs_ref[7:8, :]

    # --- residual + LayerNorm 2 ----------------------------------------------
    o_ref[...] = _layernorm(x1 + f, vecs_ref[8:9, :], vecs_ref[9:10, :])


def masked_relational_transformer(x, relation_mask, params, num_heads=4,
                                  batch_block=2, compute_dtype=jnp.float32):
    """x: (B, N, D) f32, relation_mask: (N, N) binary. Returns (B, N, D) f32.

    compute_dtype=jnp.bfloat16 enables the bf16 MXU fast path (v6e/v7x);
    jnp.float32 keeps the exact f32 semantics of the PyTorch module.
    """
    B, N, D = x.shape
    if B % batch_block != 0:
        batch_block = 1
    R = batch_block * N                       # rows per grid step

    # Additive mask, tiled block-diagonally so `batch_block` batch elements
    # share one softmax/matmul; cross-batch entries get -1e9 -> exp() == 0,
    # so results are identical to per-batch attention.
    base = (1.0 - relation_mask.astype(jnp.float32)) * -1e9            # (N, N)
    eye = jnp.eye(batch_block, dtype=jnp.float32)
    mask_blk = (jnp.kron(eye, base)
                + jnp.kron(1.0 - eye, jnp.full((N, N), -1e9, jnp.float32)))  # (R, R)

    # Fused QKV weight (D, 3D) and all other mats pre-transposed -> plain x @ W.
    wqkv_t = params["in_proj_weight"].T                                 # (D, 3D)
    wo_t = params["out_proj_weight"].T                                  # (D, D)
    w1_t = params["ffn_w1"].T
    w2_t = params["ffn_w2"].T

    # Pack the 10 small per-feature vectors into one (10, D) ref.
    vecs = jnp.stack([
        params["in_proj_bias"][0 * D:1 * D],   # 0: bq
        params["in_proj_bias"][1 * D:2 * D],   # 1: bk
        params["in_proj_bias"][2 * D:3 * D],   # 2: bv
        params["out_proj_bias"],               # 3: bo
        params["ln1_gamma"],                   # 4
        params["ln1_beta"],                    # 5
        params["ffn_b1"],                      # 6
        params["ffn_b2"],                      # 7
        params["ln2_gamma"],                   # 8
        params["ln2_beta"],                    # 9
    ], axis=0)                                                          # (10, D)

    x2 = x.reshape(B * N, D)                  # free XLA-level fold of B into rows
    const = lambda shp: pl.BlockSpec(shp, lambda i: (0, 0))

    out2 = pl.pallas_call(
        functools.partial(mrt_kernel, num_heads=num_heads,
                          compute_dtype=compute_dtype),
        out_shape=jax.ShapeDtypeStruct((B * N, D), jnp.float32),
        grid=(B // batch_block,),
        in_specs=[
            pl.BlockSpec((R, D), lambda i: (i, 0)),   # x rows for this step
            const((R, R)),                            # block-diag additive mask
            const((D, 3 * D)),                        # Wqkv^T (fused)
            const((D, D)),                            # Wo^T
            const((D, D)),                            # W1^T
            const((D, D)),                            # W2^T
            const((10, D)),                           # packed biases / LN params
        ],
        out_specs=pl.BlockSpec((R, D), lambda i: (i, 0)),
        compiler_params=pltpu.CompilerParams(
            dimension_semantics=("parallel",),        # >=2 steps feeds both v7x TCs
            vmem_limit_bytes=32 * 1024 * 1024),
    )(x2, mask_blk, wqkv_t, wo_t, w1_t, w2_t, vecs)
    return out2.reshape(B, N, D)


def reference_jax(x, relation_mask, params, num_heads=4):
    """Pure-JAX reference with identical semantics (for correctness check)."""
    B, N, D = x.shape
    hd = D // num_heads
    mask_add = (1.0 - relation_mask.astype(jnp.float32)) * -1e9
    wq = params["in_proj_weight"][0 * D:1 * D]
    wk = params["in_proj_weight"][1 * D:2 * D]
    wv = params["in_proj_weight"][2 * D:3 * D]
    bq = params["in_proj_bias"][0 * D:1 * D]
    bk = params["in_proj_bias"][1 * D:2 * D]
    bv = params["in_proj_bias"][2 * D:3 * D]
    q = x @ wq.T + bq
    k = x @ wk.T + bk
    v = x @ wv.T + bv
    q = q.reshape(B, N, num_heads, hd).transpose(0, 2, 1, 3)
    k = k.reshape(B, N, num_heads, hd).transpose(0, 2, 1, 3)
    v = v.reshape(B, N, num_heads, hd).transpose(0, 2, 1, 3)
    s = jnp.einsum("bhqd,bhkd->bhqk", q, k) / math.sqrt(hd) + mask_add
    p = jax.nn.softmax(s, axis=-1)
    o = jnp.einsum("bhqk,bhkd->bhqd", p, v).transpose(0, 2, 1, 3).reshape(B, N, D)
    attn = o @ params["out_proj_weight"].T + params["out_proj_bias"]

    def ln(y, g, b, eps=1e-5):
        mu = jnp.mean(y, -1, keepdims=True)
        var = jnp.mean((y - mu) ** 2, -1, keepdims=True)
        return (y - mu) / jnp.sqrt(var + eps) * g + b

    x1 = ln(x + attn, params["ln1_gamma"], params["ln1_beta"])
    h1 = jnp.maximum(x1 @ params["ffn_w1"].T + params["ffn_b1"], 0.0)
    f = h1 @ params["ffn_w2"].T + params["ffn_b2"]
    return ln(x1 + f, params["ln2_gamma"], params["ln2_beta"])


def init_params(key, hidden_dim):
    D = hidden_dim
    ks = jax.random.split(key, 8)
    scale = 1.0 / math.sqrt(D)
    return {
        "in_proj_weight": jax.random.normal(ks[0], (3 * D, D), jnp.float32) * scale,
        "in_proj_bias": jax.random.normal(ks[1], (3 * D,), jnp.float32) * 0.02,
        "out_proj_weight": jax.random.normal(ks[2], (D, D), jnp.float32) * scale,
        "out_proj_bias": jax.random.normal(ks[3], (D,), jnp.float32) * 0.02,
        "ln1_gamma": jnp.ones((D,), jnp.float32),
        "ln1_beta": jnp.zeros((D,), jnp.float32),
        "ffn_w1": jax.random.normal(ks[4], (D, D), jnp.float32) * scale,
        "ffn_b1": jax.random.normal(ks[5], (D,), jnp.float32) * 0.02,
        "ffn_w2": jax.random.normal(ks[6], (D, D), jnp.float32) * scale,
        "ffn_b2": jax.random.normal(ks[7], (D,), jnp.float32) * 0.02,
        "ln2_gamma": jnp.ones((D,), jnp.float32),
        "ln2_beta": jnp.zeros((D,), jnp.float32),
    }


if __name__ == "__main__":
    B, N, D, H = 4, 8, 32, 4
    key = jax.random.PRNGKey(0)
    kx, kmask, kparam = jax.random.split(key, 3)

    x = jax.random.normal(kx, (B, N, D), jnp.float32)
    relation_mask = (jax.random.uniform(kmask, (N, N)) > 0.4).astype(jnp.float32)
    relation_mask = jnp.maximum(relation_mask, jnp.eye(N, dtype=jnp.float32))  # self-attn allowed
    params = init_params(kparam, D)

    ref = reference_jax(x, relation_mask, params, num_heads=H)

    # f32 everywhere: faithful to the PyTorch f32 module.
    out = masked_relational_transformer(x, relation_mask, params, num_heads=H,
                                        batch_block=2, compute_dtype=jnp.float32)
    out = jax.block_until_ready(out)
    np.testing.assert_allclose(np.asarray(out), np.asarray(ref), rtol=1e-4, atol=2e-4)

    # bf16 MXU operands (v6e/v7x fast path); f32 accumulation, f32 softmax/LN.
    # Coarser tolerance reflects bf16 rounding of the matmul inputs only.
    out_bf16 = masked_relational_transformer(x, relation_mask, params, num_heads=H,
                                             batch_block=2,
                                             compute_dtype=jnp.bfloat16)
    out_bf16 = jax.block_until_ready(out_bf16)
    np.testing.assert_allclose(np.asarray(out_bf16), np.asarray(ref),
                               rtol=5e-2, atol=5e-2)

    print("KERNEL_OK")
</pallas_src>

<mosaic_0001>
module attributes {stable_mosaic.version = 11 : i64} {
  func.func @mrt_kernel(%arg0: i32, %arg1: memref<16x32xf32, #tpu.memory_space<vmem>>, %arg2: memref<16x16xf32, #tpu.memory_space<vmem>>, %arg3: memref<32x96xf32, #tpu.memory_space<vmem>>, %arg4: memref<32x32xf32, #tpu.memory_space<vmem>>, %arg5: memref<32x32xf32, #tpu.memory_space<vmem>>, %arg6: memref<32x32xf32, #tpu.memory_space<vmem>>, %arg7: memref<10x32xf32, #tpu.memory_space<vmem>>, %arg8: memref<16x32xf32, #tpu.memory_space<vmem>>) attributes {dimension_semantics = [#tpu.dimension_semantics<parallel>], iteration_bounds = array<i64: 2>, scalar_prefetch = 0 : i64, scratch_operands = 0 : i64, tpu.core_type = #tpu.core_type<tc>, window_params = [{transform_indices = @transform_0, window_bounds = array<i64: 16, 32>}, {pipeline_mode = #tpu.pipeline_mode<synchronous>, transform_indices = @transform_1, window_bounds = array<i64: 16, 16>}, {pipeline_mode = #tpu.pipeline_mode<synchronous>, transform_indices = @transform_2, window_bounds = array<i64: 32, 96>}, {pipeline_mode = #tpu.pipeline_mode<synchronous>, transform_indices = @transform_3, window_bounds = array<i64: 32, 32>}, {pipeline_mode = #tpu.pipeline_mode<synchronous>, transform_indices = @transform_4, window_bounds = array<i64: 32, 32>}, {pipeline_mode = #tpu.pipeline_mode<synchronous>, transform_indices = @transform_5, window_bounds = array<i64: 32, 32>}, {pipeline_mode = #tpu.pipeline_mode<synchronous>, transform_indices = @transform_6, window_bounds = array<i64: 10, 32>}, {transform_indices = @transform_7, window_bounds = array<i64: 16, 32>}]} {
    %c0 = arith.constant 0 : index
    %c0_0 = arith.constant 0 : index
    %0 = vector.load %arg1[%c0, %c0_0] : memref<16x32xf32, #tpu.memory_space<vmem>>, vector<16x32xf32>
    %c0_1 = arith.constant 0 : index
    %c0_2 = arith.constant 0 : index
    %1 = vector.load %arg3[%c0_1, %c0_2] : memref<32x96xf32, #tpu.memory_space<vmem>>, vector<32x96xf32>
    %cst = arith.constant dense<0.000000e+00> : vector<16x96xf32>
    %2 = tpu.matmul %0, %1, %cst {dimension_numbers = #tpu.dot_dimension_numbers<[1], [0], [0], [1], [0, 0, 1, 1], [], []>} : vector<16x32xf32>, vector<32x96xf32>, vector<16x96xf32> -> vector<16x96xf32>
    %3 = vector.extract_strided_slice %2 {offsets = [0, 0], sizes = [16, 32], strides = [1, 1]} : vector<16x96xf32> to vector<16x32xf32>
    %c0_3 = arith.constant 0 : index
    %c0_4 = arith.constant 0 : index
    %4 = vector.load %arg7[%c0_3, %c0_4] : memref<10x32xf32, #tpu.memory_space<vmem>>, vector<1x32xf32>
    %5 = vector.broadcast %4 : vector<1x32xf32> to vector<16x32xf32>
    %6 = arith.addf %3, %5 : vector<16x32xf32>
    %7 = vector.extract_strided_slice %2 {offsets = [0, 32], sizes = [16, 32], strides = [1, 1]} : vector<16x96xf32> to vector<16x32xf32>
    %c1 = arith.constant 1 : index
    %c0_5 = arith.constant 0 : index
    %8 = vector.load %arg7[%c1, %c0_5] : memref<10x32xf32, #tpu.memory_space<vmem>>, vector<1x32xf32>
    %9 = vector.broadcast %8 : vector<1x32xf32> to vector<16x32xf32>
    %10 = arith.addf %7, %9 : vector<16x32xf32>
    %11 = vector.extract_strided_slice %2 {offsets = [0, 64], sizes = [16, 32], strides = [1, 1]} : vector<16x96xf32> to vector<16x32xf32>
    %c2 = arith.constant 2 : index
    %c0_6 = arith.constant 0 : index
    %12 = vector.load %arg7[%c2, %c0_6] : memref<10x32xf32, #tpu.memory_space<vmem>>, vector<1x32xf32>
    %13 = vector.broadcast %12 : vector<1x32xf32> to vector<16x32xf32>
    %14 = arith.addf %11, %13 : vector<16x32xf32>
    %c0_7 = arith.constant 0 : index
    %c0_8 = arith.constant 0 : index
    %15 = vector.load %arg2[%c0_7, %c0_8] : memref<16x16xf32, #tpu.memory_space<vmem>>, vector<16x16xf32>
    %cst_9 = arith.constant 0.000000e+00 : f32
    %16 = vector.broadcast %cst_9 : f32 to vector<16x32xf32>
    %17 = vector.extract_strided_slice %6 {offsets = [0, 0], sizes = [16, 8], strides = [1, 1]} : vector<16x32xf32> to vector<16x8xf32>
    %18 = vector.extract_strided_slice %10 {offsets = [0, 0], sizes = [16, 8], strides = [1, 1]} : vector<16x32xf32> to vector<16x8xf32>
    %19 = vector.extract_strided_slice %14 {offsets = [0, 0], sizes = [16, 8], strides = [1, 1]} : vector<16x32xf32> to vector<16x8xf32>
    %cst_10 = arith.constant dense<0.000000e+00> : vector<16x16xf32>
    %20 = tpu.matmul %17, %18, %cst_10 {dimension_numbers = #tpu.dot_dimension_numbers<[1], [1], [0], [0], [0, 0, 1, 0], [], []>} : vector<16x8xf32>, vector<16x8xf32>, vector<16x16xf32> -> vector<16x16xf32>
    %cst_11 = arith.constant 0.353553385 : f32
    %21 = vector.broadcast %cst_11 : f32 to vector<16x16xf32>
    %22 = arith.mulf %20, %21 : vector<16x16xf32>
    %23 = arith.addf %22, %15 : vector<16x16xf32>
    %cst_12 = arith.constant dense<0xFF800000> : vector<16xf32>
    %24 = vector.multi_reduction <maximumf>, %23, %cst_12 [1] : vector<16x16xf32> to vector<16xf32>
    %25 = vector.shape_cast %24 : vector<16xf32> to vector<16x1xf32>
    %26 = vector.broadcast %25 : vector<16x1xf32> to vector<16x16xf32>
    %27 = arith.subf %23, %26 : vector<16x16xf32>
    %28 = math.exp %27 : vector<16x16xf32>
    %cst_13 = arith.constant dense<0.000000e+00> : vector<16xf32>
    %29 = vector.multi_reduction <add>, %28, %cst_13 [1] : vector<16x16xf32> to vector<16xf32>
    %30 = vector.shape_cast %29 : vector<16xf32> to vector<16x1xf32>
    %31 = tpu.reciprocal %30 {approx = true} : vector<16x1xf32> -> vector<16x1xf32>
    %32 = arith.mulf %30, %31 : vector<16x1xf32>
    %cst_14 = arith.constant 2.000000e+00 : f32
    %33 = vector.broadcast %cst_14 : f32 to vector<16x1xf32>
    %34 = arith.subf %33, %32 : vector<16x1xf32>
    %35 = arith.mulf %31, %34 : vector<16x1xf32>
    %36 = vector.broadcast %35 : vector<16x1xf32> to vector<16x16xf32>
    %37 = arith.mulf %28, %36 : vector<16x16xf32>
    %cst_15 = arith.constant dense<0.000000e+00> : vector<16x8xf32>
    %38 = tpu.matmul %37, %19, %cst_15 {dimension_numbers = #tpu.dot_dimension_numbers<[1], [0], [0], [1], [0, 0, 1, 1], [], []>} : vector<16x16xf32>, vector<16x8xf32>, vector<16x8xf32> -> vector<16x8xf32>
    %c0_16 = arith.constant 0 : index
    %c0_17 = arith.constant 0 : index
    %39 = vector.load %arg4[%c0_16, %c0_17] : memref<32x32xf32, #tpu.memory_space<vmem>>, vector<8x32xf32>
    %cst_18 = arith.constant dense<0.000000e+00> : vector<16x32xf32>
    %40 = tpu.matmul %38, %39, %cst_18 {dimension_numbers = #tpu.dot_dimension_numbers<[1], [0], [0], [1], [0, 0, 1, 1], [], []>} : vector<16x8xf32>, vector<8x32xf32>, vector<16x32xf32> -> vector<16x32xf32>
    %41 = arith.addf %16, %40 : vector<16x32xf32>
    %42 = vector.extract_strided_slice %6 {offsets = [0, 8], sizes = [16, 8], strides = [1, 1]} : vector<16x32xf32> to vector<16x8xf32>
    %43 = vector.extract_strided_slice %10 {offsets = [0, 8], sizes = [16, 8], strides = [1, 1]} : vector<16x32xf32> to vector<16x8xf32>
    %44 = vector.extract_strided_slice %14 {offsets = [0, 8], sizes = [16, 8], strides = [1, 1]} : vector<16x32xf32> to vector<16x8xf32>
    %cst_19 = arith.constant dense<0.000000e+00> : vector<16x16xf32>
    %45 = tpu.matmul %42, %43, %cst_19 {dimension_numbers = #tpu.dot_dimension_numbers<[1], [1], [0], [0], [0, 0, 1, 0], [], []>} : vector<16x8xf32>, vector<16x8xf32>, vector<16x16xf32> -> vector<16x16xf32>
    %cst_20 = arith.constant 0.353553385 : f32
    %46 = vector.broadcast %cst_20 : f32 to vector<16x16xf32>
    %47 = arith.mulf %45, %46 : vector<16x16xf32>
    %48 = arith.addf %47, %15 : vector<16x16xf32>
    %cst_21 = arith.constant dense<0xFF800000> : vector<16xf32>
    %49 = vector.multi_reduction <maximumf>, %48, %cst_21 [1] : vector<16x16xf32> to vector<16xf32>
    %50 = vector.shape_cast %49 : vector<16xf32> to vector<16x1xf32>
    %51 = vector.broadcast %50 : vector<16x1xf32> to vector<16x16xf32>
    %52 = arith.subf %48, %51 : vector<16x16xf32>
    %53 = math.exp %52 : vector<16x16xf32>
    %cst_22 = arith.constant dense<0.000000e+00> : vector<16xf32>
    %54 = vector.multi_reduction <add>, %53, %cst_22 [1] : vector<16x16xf32> to vector<16xf32>
    %55 = vector.shape_cast %54 : vector<16xf32> to vector<16x1xf32>
    %56 = tpu.reciprocal %55 {approx = true} : vector<16x1xf32> -> vector<16x1xf32>
    %57 = arith.mulf %55, %56 : vector<16x1xf32>
    %cst_23 = arith.constant 2.000000e+00 : f32
    %58 = vector.broadcast %cst_23 : f32 to vector<16x1xf32>
    %59 = arith.subf %58, %57 : vector<16x1xf32>
    %60 = arith.mulf %56, %59 : vector<16x1xf32>
    %61 = vector.broadcast %60 : vector<16x1xf32> to vector<16x16xf32>
    %62 = arith.mulf %53, %61 : vector<16x16xf32>
    %cst_24 = arith.constant dense<0.000000e+00> : vector<16x8xf32>
    %63 = tpu.matmul %62, %44, %cst_24 {dimension_numbers = #tpu.dot_dimension_numbers<[1], [0], [0], [1], [0, 0, 1, 1], [], []>} : vector<16x16xf32>, vector<16x8xf32>, vector<16x8xf32> -> vector<16x8xf32>
    %c8 = arith.constant 8 : index
    %c0_25 = arith.constant 0 : index
    %64 = vector.load %arg4[%c8, %c0_25] : memref<32x32xf32, #tpu.memory_space<vmem>>, vector<8x32xf32>
    %cst_26 = arith.constant dense<0.000000e+00> : vector<16x32xf32>
    %65 = tpu.matmul %63, %64, %cst_26 {dimension_numbers = #tpu.dot_dimension_numbers<[1], [0], [0], [1], [0, 0, 1, 1], [], []>} : vector<16x8xf32>, vector<8x32xf32>, vector<16x32xf32> -> vector<16x32xf32>
    %66 = arith.addf %41, %65 : vector<16x32xf32>
    %67 = vector.extract_strided_slice %6 {offsets = [0, 16], sizes = [16, 8], strides = [1, 1]} : vector<16x32xf32> to vector<16x8xf32>
    %68 = vector.extract_strided_slice %10 {offsets = [0, 16], sizes = [16, 8], strides = [1, 1]} : vector<16x32xf32> to vector<16x8xf32>
    %69 = vector.extract_strided_slice %14 {offsets = [0, 16], sizes = [16, 8], strides = [1, 1]} : vector<16x32xf32> to vector<16x8xf32>
    %cst_27 = arith.constant dense<0.000000e+00> : vector<16x16xf32>
    %70 = tpu.matmul %67, %68, %cst_27 {dimension_numbers = #tpu.dot_dimension_numbers<[1], [1], [0], [0], [0, 0, 1, 0], [], []>} : vector<16x8xf32>, vector<16x8xf32>, vector<16x16xf32> -> vector<16x16xf32>
    %cst_28 = arith.constant 0.353553385 : f32
    %71 = vector.broadcast %cst_28 : f32 to vector<16x16xf32>
    %72 = arith.mulf %70, %71 : vector<16x16xf32>
    %73 = arith.addf %72, %15 : vector<16x16xf32>
    %cst_29 = arith.constant dense<0xFF800000> : vector<16xf32>
    %74 = vector.multi_reduction <maximumf>, %73, %cst_29 [1] : vector<16x16xf32> to vector<16xf32>
    %75 = vector.shape_cast %74 : vector<16xf32> to vector<16x1xf32>
    %76 = vector.broadcast %75 : vector<16x1xf32> to vector<16x16xf32>
    %77 = arith.subf %73, %76 : vector<16x16xf32>
    %78 = math.exp %77 : vector<16x16xf32>
    %cst_30 = arith.constant dense<0.000000e+00> : vector<16xf32>
    %79 = vector.multi_reduction <add>, %78, %cst_30 [1] : vector<16x16xf32> to vector<16xf32>
    %80 = vector.shape_cast %79 : vector<16xf32> to vector<16x1xf32>
    %81 = tpu.reciprocal %80 {approx = true} : vector<16x1xf32> -> vector<16x1xf32>
    %82 = arith.mulf %80, %81 : vector<16x1xf32>
    %cst_31 = arith.constant 2.000000e+00 : f32
    %83 = vector.broadcast %cst_31 : f32 to vector<16x1xf32>
    %84 = arith.subf %83, %82 : vector<16x1xf32>
    %85 = arith.mulf %81, %84 : vector<16x1xf32>
    %86 = vector.broadcast %85 : vector<16x1xf32> to vector<16x16xf32>
    %87 = arith.mulf %78, %86 : vector<16x16xf32>
    %cst_32 = arith.constant dense<0.000000e+00> : vector<16x8xf32>
    %88 = tpu.matmul %87, %69, %cst_32 {dimension_numbers = #tpu.dot_dimension_numbers<[1], [0], [0], [1], [0, 0, 1, 1], [], []>} : vector<16x16xf32>, vector<16x8xf32>, vector<16x8xf32> -> vector<16x8xf32>
    %c16 = arith.constant 16 : index
    %c0_33 = arith.constant 0 : index
    %89 = vector.load %arg4[%c16, %c0_33] : memref<32x32xf32, #tpu.memory_space<vmem>>, vector<8x32xf32>
    %cst_34 = arith.constant dense<0.000000e+00> : vector<16x32xf32>
    %90 = tpu.matmul %88, %89, %cst_34 {dimension_numbers = #tpu.dot_dimension_numbers<[1], [0], [0], [1], [0, 0, 1, 1], [], []>} : vector<16x8xf32>, vector<8x32xf32>, vector<16x32xf32> -> vector<16x32xf32>
    %91 = arith.addf %66, %90 : vector<16x32xf32>
    %92 = vector.extract_strided_slice %6 {offsets = [0, 24], sizes = [16, 8], strides = [1, 1]} : vector<16x32xf32> to vector<16x8xf32>
    %93 = vector.extract_strided_slice %10 {offsets = [0, 24], sizes = [16, 8], strides = [1, 1]} : vector<16x32xf32> to vector<16x8xf32>
    %94 = vector.extract_strided_slice %14 {offsets = [0, 24], sizes = [16, 8], strides = [1, 1]} : vector<16x32xf32> to vector<16x8xf32>
    %cst_35 = arith.constant dense<0.000000e+00> : vector<16x16xf32>
    %95 = tpu.matmul %92, %93, %cst_35 {dimension_numbers = #tpu.dot_dimension_numbers<[1], [1], [0], [0], [0, 0, 1, 0], [], []>} : vector<16x8xf32>, vector<16x8xf32>, vector<16x16xf32> -> vector<16x16xf32>
    %cst_36 = arith.constant 0.353553385 : f32
    %96 = vector.broadcast %cst_36 : f32 to vector<16x16xf32>
    %97 = arith.mulf %95, %96 : vector<16x16xf32>
    %98 = arith.addf %97, %15 : vector<16x16xf32>
    %cst_37 = arith.constant dense<0xFF800000> : vector<16xf32>
    %99 = vector.multi_reduction <maximumf>, %98, %cst_37 [1] : vector<16x16xf32> to vector<16xf32>
    %100 = vector.shape_cast %99 : vector<16xf32> to vector<16x1xf32>
    %101 = vector.broadcast %100 : vector<16x1xf32> to vector<16x16xf32>
    %102 = arith.subf %98, %101 : vector<16x16xf32>
    %103 = math.exp %102 : vector<16x16xf32>
    %cst_38 = arith.constant dense<0.000000e+00> : vector<16xf32>
    %104 = vector.multi_reduction <add>, %103, %cst_38 [1] : vector<16x16xf32> to vector<16xf32>
    %105 = vector.shape_cast %104 : vector<16xf32> to vector<16x1xf32>
    %106 = tpu.reciprocal %105 {approx = true} : vector<16x1xf32> -> vector<16x1xf32>
    %107 = arith.mulf %105, %106 : vector<16x1xf32>
    %cst_39 = arith.constant 2.000000e+00 : f32
    %108 = vector.broadcast %cst_39 : f32 to vector<16x1xf32>
    %109 = arith.subf %108, %107 : vector<16x1xf32>
    %110 = arith.mulf %106, %109 : vector<16x1xf32>
    %111 = vector.broadcast %110 : vector<16x1xf32> to vector<16x16xf32>
    %112 = arith.mulf %103, %111 : vector<16x16xf32>
    %cst_40 = arith.constant dense<0.000000e+00> : vector<16x8xf32>
    %113 = tpu.matmul %112, %94, %cst_40 {dimension_numbers = #tpu.dot_dimension_numbers<[1], [0], [0], [1], [0, 0, 1, 1], [], []>} : vector<16x16xf32>, vector<16x8xf32>, vector<16x8xf32> -> vector<16x8xf32>
    %c24 = arith.constant 24 : index
    %c0_41 = arith.constant 0 : index
    %114 = vector.load %arg4[%c24, %c0_41] : memref<32x32xf32, #tpu.memory_space<vmem>>, vector<8x32xf32>
    %cst_42 = arith.constant dense<0.000000e+00> : vector<16x32xf32>
    %115 = tpu.matmul %113, %114, %cst_42 {dimension_numbers = #tpu.dot_dimension_numbers<[1], [0], [0], [1], [0, 0, 1, 1], [], []>} : vector<16x8xf32>, vector<8x32xf32>, vector<16x32xf32> -> vector<16x32xf32>
    %116 = arith.addf %91, %115 : vector<16x32xf32>
    %c3 = arith.constant 3 : index
    %c0_43 = arith.constant 0 : index
    %117 = vector.load %arg7[%c3, %c0_43] : memref<10x32xf32, #tpu.memory_space<vmem>>, vector<1x32xf32>
    %118 = vector.broadcast %117 : vector<1x32xf32> to vector<16x32xf32>
    %119 = arith.addf %116, %118 : vector<16x32xf32>
    %120 = arith.addf %0, %119 : vector<16x32xf32>
    %c4 = arith.constant 4 : index
    %c0_44 = arith.constant 0 : index
    %121 = vector.load %arg7[%c4, %c0_44] : memref<10x32xf32, #tpu.memory_space<vmem>>, vector<1x32xf32>
    %c5 = arith.constant 5 : index
    %c0_45 = arith.constant 0 : index
    %122 = vector.load %arg7[%c5, %c0_45] : memref<10x32xf32, #tpu.memory_space<vmem>>, vector<1x32xf32>
    %cst_46 = arith.constant dense<0.000000e+00> : vector<16xf32>
    %123 = vector.multi_reduction <add>, %120, %cst_46 [1] : vector<16x32xf32> to vector<16xf32>
    %124 = vector.shape_cast %123 : vector<16xf32> to vector<16x1xf32>
    %cst_47 = arith.constant 3.200000e+01 : f32
    %125 = vector.broadcast %cst_47 : f32 to vector<16x1xf32>
    %126 = arith.divf %124, %125 : vector<16x1xf32>
    %127 = vector.broadcast %126 : vector<16x1xf32> to vector<16x32xf32>
    %128 = arith.subf %120, %127 : vector<16x32xf32>
    %129 = arith.mulf %128, %128 : vector<16x32xf32>
    %cst_48 = arith.constant dense<0.000000e+00> : vector<16xf32>
    %130 = vector.multi_reduction <add>, %129, %cst_48 [1] : vector<16x32xf32> to vector<16xf32>
    %131 = vector.shape_cast %130 : vector<16xf32> to vector<16x1xf32>
    %cst_49 = arith.constant 3.200000e+01 : f32
    %132 = vector.broadcast %cst_49 : f32 to vector<16x1xf32>
    %133 = arith.divf %131, %132 : vector<16x1xf32>
    %134 = vector.broadcast %126 : vector<16x1xf32> to vector<16x32xf32>
    %135 = arith.subf %120, %134 : vector<16x32xf32>
    %cst_50 = arith.constant 9.99999974E-6 : f32
    %136 = vector.broadcast %cst_50 : f32 to vector<16x1xf32>
    %137 = arith.addf %133, %136 : vector<16x1xf32>
    %138 = math.rsqrt %137 : vector<16x1xf32>
    %139 = vector.broadcast %138 : vector<16x1xf32> to vector<16x32xf32>
    %140 = arith.mulf %135, %139 : vector<16x32xf32>
    %141 = vector.broadcast %121 : vector<1x32xf32> to vector<16x32xf32>
    %142 = arith.mulf %140, %141 : vector<16x32xf32>
    %143 = vector.broadcast %122 : vector<1x32xf32> to vector<16x32xf32>
    %144 = arith.addf %142, %143 : vector<16x32xf32>
    %c0_51 = arith.constant 0 : index
    %c0_52 = arith.constant 0 : index
    %145 = vector.load %arg5[%c0_51, %c0_52] : memref<32x32xf32, #tpu.memory_space<vmem>>, vector<32x32xf32>
    %cst_53 = arith.constant dense<0.000000e+00> : vector<16x32xf32>
    %146 = tpu.matmul %144, %145, %cst_53 {dimension_numbers = #tpu.dot_dimension_numbers<[1], [0], [0], [1], [0, 0, 1, 1], [], []>} : vector<16x32xf32>, vector<32x32xf32>, vector<16x32xf32> -> vector<16x32xf32>
    %c6 = arith.constant 6 : index
    %c0_54 = arith.constant 0 : index
    %147 = vector.load %arg7[%c6, %c0_54] : memref<10x32xf32, #tpu.memory_space<vmem>>, vector<1x32xf32>
    %148 = vector.broadcast %147 : vector<1x32xf32> to vector<16x32xf32>
    %149 = arith.addf %146, %148 : vector<16x32xf32>
    %cst_55 = arith.constant 0.000000e+00 : f32
    %150 = vector.broadcast %cst_55 : f32 to vector<16x32xf32>
    %151 = arith.maximumf %149, %150 : vector<16x32xf32>
    %c0_56 = arith.constant 0 : index
    %c0_57 = arith.constant 0 : index
    %152 = vector.load %arg6[%c0_56, %c0_57] : memref<32x32xf32, #tpu.memory_space<vmem>>, vector<32x32xf32>
    %cst_58 = arith.constant dense<0.000000e+00> : vector<16x32xf32>
    %153 = tpu.matmul %151, %152, %cst_58 {dimension_numbers = #tpu.dot_dimension_numbers<[1], [0], [0], [1], [0, 0, 1, 1], [], []>} : vector<16x32xf32>, vector<32x32xf32>, vector<16x32xf32> -> vector<16x32xf32>
    %c7 = arith.constant 7 : index
    %c0_59 = arith.constant 0 : index
    %154 = vector.load %arg7[%c7, %c0_59] : memref<10x32xf32, #tpu.memory_space<vmem>>, vector<1x32xf32>
    %155 = vector.broadcast %154 : vector<1x32xf32> to vector<16x32xf32>
    %156 = arith.addf %153, %155 : vector<16x32xf32>
    %157 = arith.addf %144, %156 : vector<16x32xf32>
    %c8_60 = arith.constant 8 : index
    %c0_61 = arith.constant 0 : index
    %158 = vector.load %arg7[%c8_60, %c0_61] : memref<10x32xf32, #tpu.memory_space<vmem>>, vector<1x32xf32>
    %c9 = arith.constant 9 : index
    %c0_62 = arith.constant 0 : index
    %159 = vector.load %arg7[%c9, %c0_62] : memref<10x32xf32, #tpu.memory_space<vmem>>, vector<1x32xf32>
    %cst_63 = arith.constant dense<0.000000e+00> : vector<16xf32>
    %160 = vector.multi_reduction <add>, %157, %cst_63 [1] : vector<16x32xf32> to vector<16xf32>
    %161 = vector.shape_cast %160 : vector<16xf32> to vector<16x1xf32>
    %cst_64 = arith.constant 3.200000e+01 : f32
    %162 = vector.broadcast %cst_64 : f32 to vector<16x1xf32>
    %163 = arith.divf %161, %162 : vector<16x1xf32>
    %164 = vector.broadcast %163 : vector<16x1xf32> to vector<16x32xf32>
    %165 = arith.subf %157, %164 : vector<16x32xf32>
    %166 = arith.mulf %165, %165 : vector<16x32xf32>
    %cst_65 = arith.constant dense<0.000000e+00> : vector<16xf32>
    %167 = vector.multi_reduction <add>, %166, %cst_65 [1] : vector<16x32xf32> to vector<16xf32>
    %168 = vector.shape_cast %167 : vector<16xf32> to vector<16x1xf32>
    %cst_66 = arith.constant 3.200000e+01 : f32
    %169 = vector.broadcast %cst_66 : f32 to vector<16x1xf32>
    %170 = arith.divf %168, %169 : vector<16x1xf32>
    %171 = vector.broadcast %163 : vector<16x1xf32> to vector<16x32xf32>
    %172 = arith.subf %157, %171 : vector<16x32xf32>
    %cst_67 = arith.constant 9.99999974E-6 : f32
    %173 = vector.broadcast %cst_67 : f32 to vector<16x1xf32>
    %174 = arith.addf %170, %173 : vector<16x1xf32>
    %175 = math.rsqrt %174 : vector<16x1xf32>
    %176 = vector.broadcast %175 : vector<16x1xf32> to vector<16x32xf32>
    %177 = arith.mulf %172, %176 : vector<16x32xf32>
    %178 = vector.broadcast %158 : vector<1x32xf32> to vector<16x32xf32>
    %179 = arith.mulf %177, %178 : vector<16x32xf32>
    %180 = vector.broadcast %159 : vector<1x32xf32> to vector<16x32xf32>
    %181 = arith.addf %179, %180 : vector<16x32xf32>
    %c0_68 = arith.constant 0 : index
    %c0_69 = arith.constant 0 : index
    %182 = vector.load %arg8[%c0_68, %c0_69] : memref<16x32xf32, #tpu.memory_space<vmem>>, vector<16x32xf32>
    tpu.vector_store %arg8[%c0_68, %c0_69], %181 {strides = array<i32>} : memref<16x32xf32, #tpu.memory_space<vmem>>, vector<16x32xf32>,
    return
  }
  func.func @transform_0(%arg0: i32) -> (i32, i32) {
    %c0_i32 = arith.constant 0 : i32
    %c0_i32_0 = arith.constant 0 : i32
    return %arg0, %c0_i32 : i32, i32
  }
  func.func @transform_1(%arg0: i32) -> (i32, i32) {
    %c0_i32 = arith.constant 0 : i32
    %c0_i32_0 = arith.constant 0 : i32
    %c0_i32_1 = arith.constant 0 : i32
    return %c0_i32, %c0_i32_0 : i32, i32
  }
  func.func @transform_2(%arg0: i32) -> (i32, i32) {
    %c0_i32 = arith.constant 0 : i32
    %c0_i32_0 = arith.constant 0 : i32
    %c0_i32_1 = arith.constant 0 : i32
    return %c0_i32, %c0_i32_0 : i32, i32
  }
  func.func @transform_3(%arg0: i32) -> (i32, i32) {
    %c0_i32 = arith.constant 0 : i32
    %c0_i32_0 = arith.constant 0 : i32
    %c0_i32_1 = arith.constant 0 : i32
    return %c0_i32, %c0_i32_0 : i32, i32
  }
  func.func @transform_4(%arg0: i32) -> (i32, i32) {
    %c0_i32 = arith.constant 0 : i32
    %c0_i32_0 = arith.constant 0 : i32
    %c0_i32_1 = arith.constant 0 : i32
    return %c0_i32, %c0_i32_0 : i32, i32
  }
  func.func @transform_5(%arg0: i32) -> (i32, i32) {
    %c0_i32 = arith.constant 0 : i32
    %c0_i32_0 = arith.constant 0 : i32
    %c0_i32_1 = arith.constant 0 : i32
    return %c0_i32, %c0_i32_0 : i32, i32
  }
  func.func @transform_6(%arg0: i32) -> (i32, i32) {
    %c0_i32 = arith.constant 0 : i32
    %c0_i32_0 = arith.constant 0 : i32
    %c0_i32_1 = arith.constant 0 : i32
    return %c0_i32, %c0_i32_0 : i32, i32
  }
  func.func @transform_7(%arg0: i32) -> (i32, i32) {
    %c0_i32 = arith.constant 0 : i32
    %c0_i32_0 = arith.constant 0 : i32
    return %arg0, %c0_i32 : i32, i32
  }
}

</mosaic_0001>

<llo_original>
// kernel: tpu_custom_call.1
$region0: #{tpu_custom_call.1}
  #allocation0 [shape = 'u32[]', space=smem, size = 0x4, offset = 0x4, fixed_abs, tag = 'smem constant byte address 0x4 - core index']
  #allocation1 [shape = 'u32[144,128]{1,0:T(1,128)}', space=vmem, size = 0x12000, scoped, tag = 'internal scratch']
  %s0 = inlined_call_operand.hbm [shape: f32[32,32], index: 0, kind: input, shape index: {}]
  %s1 = inlined_call_operand.hbm [shape: f32[16,16], index: 1, kind: input, shape index: {}]
  %s2 = inlined_call_operand.hbm [shape: f32[32,96], index: 2, kind: input, shape index: {}]
  %s3 = inlined_call_operand.hbm [shape: f32[32,32], index: 3, kind: input, shape index: {}]
  %s4 = inlined_call_operand.hbm [shape: f32[32,32], index: 4, kind: input, shape index: {}]
  %s5 = inlined_call_operand.hbm [shape: f32[32,32], index: 5, kind: input, shape index: {}]
  %s6 = inlined_call_operand.vmem [shape: f32[10,32], index: 6, kind: input, shape index: {}]
  %s7 = inlined_call_operand.hbm [shape: f32[32,32], index: 7, kind: output, shape index: {}]
  %s8 = sld [smem:[#allocation0]]
  $region85: #{tpu_custom_call.1} parent=0
    _
  %s10 = ssub.s32 1, %s8
  %s11 = scalar_select 0, %s10, %s8
  $region1: #{tpu_custom_call.1} parent=0
    #allocation2 [shape = 'u8[16384]{0}', space=vmem, size = 0x4000, scoped, tag = 'input window, operand 0']
    #allocation3 [shape = 's32[2]{0}', space=sflag, size = 0x8, scoped, tag = 'scoped memory for tpu_custom_call.1']
    #allocation4 [shape = 's32[2]{0}', space=sflag, size = 0x8, scoped, tag = 'scoped memory for tpu_custom_call.1']
    #allocation5 [shape = 'u8[8192]{0}', space=vmem, size = 0x2000, scoped, tag = 'input window, operand 1, single buffered']
    #allocation6 [shape = 's32[1]{0}', space=sflag, size = 0x4, scoped, tag = 'scoped memory for tpu_custom_call.1']
    #allocation7 [shape = 'u8[16384]{0}', space=vmem, size = 0x4000, scoped, tag = 'input window, operand 2, single buffered']
    #allocation8 [shape = 'u8[16384]{0}', space=vmem, size = 0x4000, scoped, tag = 'input window, operand 3, single buffered']
    #allocation9 [shape = 's32[1]{0}', space=sflag, size = 0x4, scoped, tag = 'scoped memory for tpu_custom_call.1']
    #allocation10 [shape = 'u8[16384]{0}', space=vmem, size = 0x4000, scoped, tag = 'input window, operand 4, single buffered']
    #allocation11 [shape = 'u8[16384]{0}', space=vmem, size = 0x4000, scoped, tag = 'input window, operand 5, single buffered']
    #allocation12 [shape = 's32[1]{0}', space=sflag, size = 0x4, scoped, tag = 'scoped memory for tpu_custom_call.1']
    #allocation13 [shape = 'u8[16384]{0}', space=vmem, size = 0x4000, scoped, tag = 'output window, operand 0']
    %12 = vsyncpa [#allocation3], 0
    %s13 = scalar_lea.sflag [#allocation3], 1
    %14 = vsyncpa %s13, 0
    %15 = vsyncpa [#allocation6], 0
    %16 = vsyncpa [#allocation9], 0
    %17 = vsyncpa [#allocation12], 0
    %18 = vsyncpa [#allocation4], 0
    %s19 = scalar_lea.sflag [#allocation4], 1
    %20 = vsyncpa %s19, 0
    loop: start=0, step=1, limit=4
    $region2: #{tpu_custom_call.1} parent=1 // loop_pre_header
      _
    $region3: #{tpu_custom_call.1} parent=1 // loop_header
      %s22 = sphi 0, %s26
      %p23 = scmp.ge.s32.totalorder %s22, 4
      %s32 = sphi 0, %s34
      %s35 = sphi 0, %s32
      %s36 = sphi 0, %s35
      %s52 = sphi 0, %s36
      %s56 = sphi 0, %s56
      %s58 = sphi 0, %s56
      %s59 = sphi 0, %s58
      %s73 = sphi 0, %s59
      %s77 = sphi 0, %s77
      %s79 = sphi 0, %s77
      %s80 = sphi 0, %s79
      %s94 = sphi 0, %s80
      %s98 = sphi 0, %s98
      %s100 = sphi 0, %s98
      %s101 = sphi 0, %s100
      %s115 = sphi 0, %s101
      %s119 = sphi 0, %s119
      %s121 = sphi 0, %s119
      %s122 = sphi 0, %s121
      %s136 = sphi 0, %s122
      %s140 = sphi 0, %s140
      %s142 = sphi 0, %s140
      %s143 = sphi 0, %s142
      %s157 = sphi 0, %s143
      %s161 = sphi 0, %s161
      %s163 = sphi 0, %s161
      %s164 = sphi 0, %s163
      %s178 = sphi 0, %s164
      %s184 = sphi 0, %s186
      %s187 = sphi 0, %s184
      %s188 = sphi 0, %s187
      %s204 = sphi 0, %s188
    $region4: #{tpu_custom_call.1} parent=1 // loop_header_branch
      %25 = sbr.rel (%p23) target = $region8
    $region5: #{tpu_custom_call.1} parent=1 // loop_body
      %s27 = ssub.s32 %s22, 1
      %s28 = ssub.s32 %s22, 2
      %s29 = sadd.s32 %s22, 1
      %s30 = ssub.s32 %s22, %s29
      %p31 = scmp.eq.s32.totalorder %s30, 0
      %s33 = sadd.s32 %s32, 1
      %s34 = scalar_select %p31, %s32, %s33
      %p37 = pneg %p31
      %p38 = scmp.eq.s32.totalorder %s22, 1
      %p39 = por %p37, %p38
      %p40 = scmp.ne.s32.totalorder %s32, %s35
      %p41 = scmp.eq.s32.totalorder %s22, 0
      %p42 = por %p40, %p41
      %p43 = scmp.ne.s32.totalorder %s32, %s35
      %p44 = scmp.eq.s32.totalorder %s27, 1
      %p45 = por %p43, %p44
      %p46 = scmp.ne.s32.totalorder %s35, %s36
      %p47 = scmp.eq.s32.totalorder %s27, 0
      %p48 = por %p46, %p47
      %p49 = scmp.ne.s32.totalorder %s35, %s36
      %p50 = scmp.eq.s32.totalorder %s28, 1
      %p51 = por %p49, %p50
      %p53 = scmp.ne.s32.totalorder %s36, %s52
      %p54 = scmp.eq.s32.totalorder %s28, 0
      %p55 = por %p53, %p54
      %s57 = sadd.s32 %s56, 1
      %p60 = scmp.eq.s32.totalorder %s22, 1
      %p61 = scmp.ne.s32.totalorder %s56, %s58
      %p62 = scmp.eq.s32.totalorder %s22, 0
      %p63 = por %p61, %p62
      %p64 = scmp.ne.s32.totalorder %s56, %s58
      %p65 = scmp.eq.s32.totalorder %s27, 1
      %p66 = por %p64, %p65
      %p67 = scmp.ne.s32.totalorder %s58, %s59
      %p68 = scmp.eq.s32.totalorder %s27, 0
      %p69 = por %p67, %p68
      %p70 = scmp.ne.s32.totalorder %s58, %s59
      %p71 = scmp.eq.s32.totalorder %s28, 1
      %p72 = por %p70, %p71
      %p74 = scmp.ne.s32.totalorder %s59, %s73
      %p75 = scmp.eq.s32.totalorder %s28, 0
      %p76 = por %p74, %p75
      %s78 = sadd.s32 %s77, 1
      %p81 = scmp.eq.s32.totalorder %s22, 1
      %p82 = scmp.ne.s32.totalorder %s77, %s79
      %p83 = scmp.eq.s32.totalorder %s22, 0
      %p84 = por %p82, %p83
      %p85 = scmp.ne.s32.totalorder %s77, %s79
      %p86 = scmp.eq.s32.totalorder %s27, 1
      %p87 = por %p85, %p86
      %p88 = scmp.ne.s32.totalorder %s79, %s80
      %p89 = scmp.eq.s32.totalorder %s27, 0
      %p90 = por %p88, %p89
      %p91 = scmp.ne.s32.totalorder %s79, %s80
      %p92 = scmp.eq.s32.totalorder %s28, 1
      %p93 = por %p91, %p92
      %p95 = scmp.ne.s32.totalorder %s80, %s94
      %p96 = scmp.eq.s32.totalorder %s28, 0
      %p97 = por %p95, %p96
      %s99 = sadd.s32 %s98, 1
      %p102 = scmp.eq.s32.totalorder %s22, 1
      %p103 = scmp.ne.s32.totalorder %s98, %s100
      %p104 = scmp.eq.s32.totalorder %s22, 0
      %p105 = por %p103, %p104
      %p106 = scmp.ne.s32.totalorder %s98, %s100
      %p107 = scmp.eq.s32.totalorder %s27, 1
      %p108 = por %p106, %p107
      %p109 = scmp.ne.s32.totalorder %s100, %s101
      %p110 = scmp.eq.s32.totalorder %s27, 0
      %p111 = por %p109, %p110
      %p112 = scmp.ne.s32.totalorder %s100, %s101
      %p113 = scmp.eq.s32.totalorder %s28, 1
      %p114 = por %p112, %p113
      %p116 = scmp.ne.s32.totalorder %s101, %s115
      %p117 = scmp.eq.s32.totalorder %s28, 0
      %p118 = por %p116, %p117
      %s120 = sadd.s32 %s119, 1
      %p123 = scmp.eq.s32.totalorder %s22, 1
      %p124 = scmp.ne.s32.totalorder %s119, %s121
      %p125 = scmp.eq.s32.totalorder %s22, 0
      %p126 = por %p124, %p125
      %p127 = scmp.ne.s32.totalorder %s119, %s121
      %p128 = scmp.eq.s32.totalorder %s27, 1
      %p129 = por %p127, %p128
      %p130 = scmp.ne.s32.totalorder %s121, %s122
      %p131 = scmp.eq.s32.totalorder %s27, 0
      %p132 = por %p130, %p131
      %p133 = scmp.ne.s32.totalorder %s121, %s122
      %p134 = scmp.eq.s32.totalorder %s28, 1
      %p135 = por %p133, %p134
      %p137 = scmp.ne.s32.totalorder %s122, %s136
      %p138 = scmp.eq.s32.totalorder %s28, 0
      %p139 = por %p137, %p138
      %s141 = sadd.s32 %s140, 1
      %p144 = scmp.eq.s32.totalorder %s22, 1
      %p145 = scmp.ne.s32.totalorder %s140, %s142
      %p146 = scmp.eq.s32.totalorder %s22, 0
      %p147 = por %p145, %p146
      %p148 = scmp.ne.s32.totalorder %s140, %s142
      %p149 = scmp.eq.s32.totalorder %s27, 1
      %p150 = por %p148, %p149
      %p151 = scmp.ne.s32.totalorder %s142, %s143
      %p152 = scmp.eq.s32.totalorder %s27, 0
      %p153 = por %p151, %p152
      %p154 = scmp.ne.s32.totalorder %s142, %s143
      %p155 = scmp.eq.s32.totalorder %s28, 1
      %p156 = por %p154, %p155
      %p158 = scmp.ne.s32.totalorder %s143, %s157
      %p159 = scmp.eq.s32.totalorder %s28, 0
      %p160 = por %p158, %p159
      %s162 = sadd.s32 %s161, 1
      %p165 = scmp.eq.s32.totalorder %s22, 1
      %p166 = scmp.ne.s32.totalorder %s161, %s163
      %p167 = scmp.eq.s32.totalorder %s22, 0
      %p168 = por %p166, %p167
      %p169 = scmp.ne.s32.totalorder %s161, %s163
      %p170 = scmp.eq.s32.totalorder %s27, 1
      %p171 = por %p169, %p170
      %p172 = scmp.ne.s32.totalorder %s163, %s164
      %p173 = scmp.eq.s32.totalorder %s27, 0
      %p174 = por %p172, %p173
      %p175 = scmp.ne.s32.totalorder %s163, %s164
      %p176 = scmp.eq.s32.totalorder %s28, 1
      %p177 = por %p175, %p176
      %p179 = scmp.ne.s32.totalorder %s164, %s178
      %p180 = scmp.eq.s32.totalorder %s28, 0
      %p181 = por %p179, %p180
      %s182 = ssub.s32 %s22, %s29
      %p183 = scmp.eq.s32.totalorder %s182, 0
      %s185 = sadd.s32 %s184, 1
      %s186 = scalar_select %p183, %s184, %s185
      %p189 = pneg %p183
      %p190 = scmp.eq.s32.totalorder %s22, 1
      %p191 = por %p189, %p190
      %p192 = scmp.ne.s32.totalorder %s184, %s187
      %p193 = scmp.eq.s32.totalorder %s22, 0
      %p194 = por %p192, %p193
      %p195 = scmp.ne.s32.totalorder %s184, %s187
      %p196 = scmp.eq.s32.totalorder %s27, 1
      %p197 = por %p195, %p196
      %p198 = scmp.ne.s32.totalorder %s187, %s188
      %p199 = scmp.eq.s32.totalorder %s27, 0
      %p200 = por %p198, %p199
      %p201 = scmp.ne.s32.totalorder %s187, %s188
      %p202 = scmp.eq.s32.totalorder %s28, 1
      %p203 = por %p201, %p202
      %p205 = scmp.ne.s32.totalorder %s188, %s204
      %p206 = scmp.eq.s32.totalorder %s28, 0
      %p207 = por %p205, %p206
      %p208 = scmp.le.s32.totalorder 1, %s22
      %p209 = scmp.lt.s32.totalorder %s22, 3
      %p210 = pnand %p208, %p209
      %p211 = pneg %p210
      // Predicated region
      $region9: #{tpu_custom_call.1} parent=5 // pred_check
        _
      $region10: #{tpu_custom_call.1} parent=5 // pred_check_branch
        %213 = sbr.rel (%p210) target = $region12
      $region11: #{tpu_custom_call.1} parent=5 // pred_region
        %s214 = ssub.s32 %s22, 1
        // Predicated region
        $region13: #{tpu_custom_call.1} parent=11 // pred_check
          %p215 = pneg %p69
        $region14: #{tpu_custom_call.1} parent=11 // pred_check_branch
          %217 = sbr.rel (%p215) target = $region16
        $region15: #{tpu_custom_call.1} parent=11 // pred_region
          %s219 = ssub.s32 256, 256
          %220 = vsyncadd [#allocation6], %s219
          %s221 = sshll.u32 [#allocation5], 4
          %s222 = int_to_ptr.vmem [resolvable:$true] %s221
          %227 = dma.hbm_to_vmem [thread:$0]  %s1, 256, %s222, [#allocation6], 128, 128, 8
        $region16: #{tpu_custom_call.1} parent=11 // pred_fallthru
          _
        // Predicated region
        $region17: #{tpu_custom_call.1} parent=11 // pred_check
          %p228 = pneg %p90
        $region18: #{tpu_custom_call.1} parent=11 // pred_check_branch
          %230 = sbr.rel (%p228) target = $region20
        $region19: #{tpu_custom_call.1} parent=11 // pred_region
          %s232 = ssub.s32 512, 512
          %233 = vsyncadd [#allocation6], %s232
          %s234 = sshll.u32 [#allocation7], 4
          %s235 = int_to_ptr.vmem [resolvable:$true] %s234
          %240 = dma.hbm_to_vmem [thread:$0]  %s2, 512, %s235, [#allocation6], 128, 128, 8
        $region20: #{tpu_custom_call.1} parent=11 // pred_fallthru
          _
        // Predicated region
        $region21: #{tpu_custom_call.1} parent=11 // pred_check
          %p241 = pneg %p111
        $region22: #{tpu_custom_call.1} parent=11 // pred_check_branch
          %243 = sbr.rel (%p241) target = $region24
        $region23: #{tpu_custom_call.1} parent=11 // pred_region
          %s245 = ssub.s32 512, 512
          %246 = vsyncadd [#allocation9], %s245
          %s247 = sshll.u32 [#allocation8], 4
          %s248 = int_to_ptr.vmem [resolvable:$true] %s247
          %253 = dma.hbm_to_vmem [thread:$0]  %s3, 512, %s248, [#allocation9], 128, 128, 8
        $region24: #{tpu_custom_call.1} parent=11 // pred_fallthru
          _
        // Predicated region
        $region25: #{tpu_custom_call.1} parent=11 // pred_check
          %p254 = pneg %p132
        $region26: #{tpu_custom_call.1} parent=11 // pred_check_branch
          %256 = sbr.rel (%p254) target = $region28
        $region27: #{tpu_custom_call.1} parent=11 // pred_region
          %s258 = ssub.s32 512, 512
          %259 = vsyncadd [#allocation9], %s258
          %s260 = sshll.u32 [#allocation10], 4
          %s261 = int_to_ptr.vmem [resolvable:$true] %s260
          %266 = dma.hbm_to_vmem [thread:$0]  %s4, 512, %s261, [#allocation9], 128, 128, 8
        $region28: #{tpu_custom_call.1} parent=11 // pred_fallthru
          _
        // Predicated region
        $region29: #{tpu_custom_call.1} parent=11 // pred_check
          %p267 = pneg %p153
        $region30: #{tpu_custom_call.1} parent=11 // pred_check_branch
          %269 = sbr.rel (%p267) target = $region32
        $region31: #{tpu_custom_call.1} parent=11 // pred_region
          %s271 = ssub.s32 512, 512
          %272 = vsyncadd [#allocation12], %s271
          %s273 = sshll.u32 [#allocation11], 4
          %s274 = int_to_ptr.vmem [resolvable:$true] %s273
          %279 = dma.hbm_to_vmem [thread:$0]  %s5, 512, %s274, [#allocation12], 128, 128, 8
        $region32: #{tpu_custom_call.1} parent=11 // pred_fallthru
          _
        // Predicated region
        $region33: #{tpu_custom_call.1} parent=11 // pred_check
          %p280 = pneg %p174
        $region34: #{tpu_custom_call.1} parent=11 // pred_check_branch
          %282 = sbr.rel (%p280) target = $region36
        $region35: #{tpu_custom_call.1} parent=11 // pred_region
          _
        $region36: #{tpu_custom_call.1} parent=11 // pred_fallthru
          _
      $region12: #{tpu_custom_call.1} parent=5 // pred_fallthru
        _
      %p283 = scmp.lt.s32.totalorder %s22, 2
      // Predicated region
      $region37: #{tpu_custom_call.1} parent=5 // pred_check
        %p284 = pneg %p283
      $region38: #{tpu_custom_call.1} parent=5 // pred_check_branch
        %286 = sbr.rel (%p284) target = $region40
      $region39: #{tpu_custom_call.1} parent=5 // pred_region
        // Predicated region
        $region41: #{tpu_custom_call.1} parent=39 // pred_check
          %p287 = pneg %p42
        $region42: #{tpu_custom_call.1} parent=39 // pred_check_branch
          %289 = sbr.rel (%p287) target = $region44
        $region43: #{tpu_custom_call.1} parent=39 // pred_region
          %s290 = sand.u32 %s32, 1
          %s291 = scalar_lea.sflag [#allocation3], %s290
          %s292 = sand.u32 %s32, 1
          %s293 = smul.addr %s292, 16
          %s294 = scalar_lea.vmem [#allocation2], %s293
          %s295 = smul.u32 2, %s22
          %s297 = ssub.s32 256, 256
          %298 = vsyncadd %s291, %s297
          %s299 = smul.addr %s295, 128
          %s300 = scalar_lea.hbm %s0, %s299
          %s301 = sshll.u32 %s294, 4
          %s302 = int_to_ptr.vmem [resolvable:$true] %s301
          %307 = dma.hbm_to_vmem [thread:$0]  %s300, 256, %s302, %s291, 128, 128, 8
        $region44: #{tpu_custom_call.1} parent=39 // pred_fallthru
          _
      $region40: #{tpu_custom_call.1} parent=5 // pred_fallthru
        _
      %p308 = scmp.le.s32.totalorder 1, %s22
      %p309 = scmp.lt.s32.totalorder %s22, 3
      %p310 = pnand %p308, %p309
      %p311 = pneg %p310
      // Predicated region
      $region45: #{tpu_custom_call.1} parent=5 // pred_check
        _
      $region46: #{tpu_custom_call.1} parent=5 // pred_check_branch
        %313 = sbr.rel (%p310) target = $region48
      $region47: #{tpu_custom_call.1} parent=5 // pred_region
        %s314 = ssub.s32 %s22, 1
        %s315 = sand.u32 %s35, 1
        %s316 = scalar_lea.sflag [#allocation3], %s315
        %s317 = sand.u32 %s35, 1
        %s318 = smul.addr %s317, 16
        %s319 = scalar_lea.vmem [#allocation2], %s318
        // Predicated region
        $region49: #{tpu_custom_call.1} parent=47 // pred_check
          %p320 = pneg %p48
        $region50: #{tpu_custom_call.1} parent=47 // pred_check_branch
          %322 = sbr.rel (%p320) target = $region52
        $region51: #{tpu_custom_call.1} parent=47 // pred_region
          %323 = dma.done %s316, 256
        $region52: #{tpu_custom_call.1} parent=47 // pred_fallthru
          _
        // Predicated region
        $region53: #{tpu_custom_call.1} parent=47 // pred_check
          %p324 = pneg %p69
        $region54: #{tpu_custom_call.1} parent=47 // pred_check_branch
          %326 = sbr.rel (%p324) target = $region56
        $region55: #{tpu_custom_call.1} parent=47 // pred_region
          %327 = dma.done [#allocation6], 256
        $region56: #{tpu_custom_call.1} parent=47 // pred_fallthru
          _
        // Predicated region
        $region57: #{tpu_custom_call.1} parent=47 // pred_check
          %p328 = pneg %p90
        $region58: #{tpu_custom_call.1} parent=47 // pred_check_branch
          %330 = sbr.rel (%p328) target = $region60
        $region59: #{tpu_custom_call.1} parent=47 // pred_region
          %331 = dma.done [#allocation6], 512
        $region60: #{tpu_custom_call.1} parent=47 // pred_fallthru
          _
        // Predicated region
        $region61: #{tpu_custom_call.1} parent=47 // pred_check
          %p332 = pneg %p111
        $region62: #{tpu_custom_call.1} parent=47 // pred_check_branch
          %334 = sbr.rel (%p332) target = $region64
        $region63: #{tpu_custom_call.1} parent=47 // pred_region
          %335 = dma.done [#allocation9], 512
        $region64: #{tpu_custom_call.1} parent=47 // pred_fallthru
          _
        // Predicated region
        $region65: #{tpu_custom_call.1} parent=47 // pred_check
          %p336 = pneg %p132
        $region66: #{tpu_custom_call.1} parent=47 // pred_check_branch
          %338 = sbr.rel (%p336) target = $region68
        $region67: #{tpu_custom_call.1} parent=47 // pred_region
          %339 = dma.done [#allocation9], 512
        $region68: #{tpu_custom_call.1} parent=47 // pred_fallthru
          _
        // Predicated region
        $region69: #{tpu_custom_call.1} parent=47 // pred_check
          %p340 = pneg %p153
        $region70: #{tpu_custom_call.1} parent=47 // pred_check_branch
          %342 = sbr.rel (%p340) target = $region72
        $region71: #{tpu_custom_call.1} parent=47 // pred_region
          %343 = dma.done [#allocation12], 512
        $region72: #{tpu_custom_call.1} parent=47 // pred_fallthru
          _
        %s344 = sand.u32 %s35, 1
        %s345 = scalar_lea.sflag [#allocation3], %s344
        %s346 = sand.u32 %s35, 1
        %s347 = smul.addr %s346, 16
        %s348 = scalar_lea.vmem [#allocation2], %s347
        %p349 = pneg %p48
        %p350 = pneg %p45
        %p351 = pneg %p69
        %p352 = pneg %p66
        %p353 = pneg %p90
        %p354 = pneg %p87
        %p355 = pneg %p111
        %p356 = pneg %p108
        %p357 = pneg %p132
        %p358 = pneg %p129
        %p359 = pneg %p153
        %p360 = pneg %p150
        %p361 = pneg %p174
        %p362 = pneg %p171
        %p363 = pneg %p200
        %p364 = pneg %p197
        %s365 = sand.u32 %s187, 1
        %s366 = scalar_lea.sflag [#allocation4], %s365
        %s367 = sand.u32 %s187, 1
        %s368 = smul.addr %s367, 16
        %s369 = scalar_lea.vmem [#allocation13], %s368
        %s370 = smul.u32 2, %s27
        %s371 = smul.u32 2, %s27
        %v372 = vld [vmem:[%s319] sm:$0xff]
        %v373 = vld [vmem:[%s319 + $0x8] sm:$0xff]
        %v374 = vld [vmem:[#allocation7] sm:$0xff]
        %v375 = vld [vmem:[#allocation7 + $0x8] sm:$0xff]
        %v376 = vld [vmem:[#allocation7 + $0x10] sm:$0xff]
        %v377 = vld [vmem:[#allocation7 + $0x18] sm:$0xff]
        %vm378 = vcmask 261120
        %v380 = vsel %vm378, %v372, 0
        %v383 = vsel %vm378, %v373, 0
        %385 = vmatprep.subr.mxu0 0.0
        %386 = vmatpush1.msra.mxu0 %v374
        %387 = vmatprep.subr.mxu0 0.0
        %388 = vmatpush1.msra.mxu0 %v375
        %389 = vmatprep.subr.mxu0 0.0
        %390 = vmatpush1.msra.mxu0 %v376
        %391 = vmatprep.subr.mxu0 0.0
        %392 = vmatpush1.msra.mxu0 %v377
        %393 = vmatprep.subr.mxu0 0.0
        %394 = vmatpush1.msra.mxu0 0.0
        %395 = vmatprep.subr.mxu0 0.0
        %396 = vmatpush1.msra.mxu0 0.0
        %397 = vmatprep.subr.mxu0 0.0
        %398 = vmatpush1.msra.mxu0 0.0
        %399 = vmatprep.subr.mxu0 0.0
        %400 = vmatpush1.msra.mxu0 0.0
        %401 = vmatprep.subr.mxu0 0.0
        %402 = vmatpush1.msra.mxu0 0.0
        %403 = vmatprep.subr.mxu0 0.0
        %404 = vmatpush1.msra.mxu0 0.0
        %405 = vmatprep.subr.mxu0 0.0
        %406 = vmatpush1.msra.mxu0 0.0
        %407 = vmatprep.subr.mxu0 0.0
        %408 = vmatpush1.msra.mxu0 0.0
        %409 = vmatprep.subr.mxu0 0.0
        %410 = vmatpush1.msra.mxu0 0.0
        %411 = vmatprep.subr.mxu0 0.0
        %412 = vmatpush1.msra.mxu0 0.0
        %413 = vmatprep.subr.mxu0 0.0
        %414 = vmatpush1.msra.mxu0 0.0
        %415 = vmatprep.subr.mxu0 0.0
        %416 = vmatpush1.msra.mxu0 0.0
        %417 = vmatprep.subr.mxu0 0.0
        %418 = vmatpush1.msra.mxu0 0.0
        %419 = vmatprep.subr.mxu0 0.0
        %420 = vmatpush1.msra.mxu0 0.0
        %421 = vmatprep.subr.mxu0 0.0
        %422 = vmatpush1.msra.mxu0 0.0
        %423 = vmatprep.subr.mxu0 0.0
        %424 = vmatpush1.msra.mxu0 0.0
        %425 = vmatprep.subr.mxu0 0.0
        %426 = vmatpush1.msra.mxu0 0.0
        %427 = vmatprep.subr.mxu0 0.0
        %428 = vmatpush1.msra.mxu0 0.0
        %429 = vmatprep.subr.mxu0 0.0
        %430 = vmatpush1.msra.mxu0 0.0
        %431 = vmatprep.subr.mxu0 0.0
        %432 = vmatpush1.msra.mxu0 0.0
        %433 = vmatprep.subr.mxu0 0.0
        %434 = vmatpush1.msra.mxu0 0.0
        %435 = vmatprep.subr.mxu0 0.0
        %436 = vmatpush1.msra.mxu0 0.0
        %437 = vmatprep.subr.mxu0 0.0
        %438 = vmatpush1.msra.mxu0 0.0
        %439 = vmatprep.subr.mxu0 0.0
        %440 = vmatpush1.msra.mxu0 0.0
        %441 = vmatprep.subr.mxu0 0.0
        %442 = vmatpush1.msra.mxu0 0.0
        %443 = vmatprep.subr.mxu0 0.0
        %444 = vmatpush1.msra.mxu0 0.0
        %445 = vmatprep.subr.mxu0 0.0
        %446 = vmatpush1.msra.mxu0 0.0
        %447 = vmatprep.subr.mxu0 0.0
        %448 = vmatpush1.msra.mxu0 0.0
        %449 = vmatprep.mubr.f32.mxu0 0.0
        %450 = vmatmul.mubr.f32.gmra.mrb[0].mxu0 %v380
        %v451 = vpop.f32.mrb[0].mxu0
        %v452 = vadd.f32 0.0, %v451
        %v453 = vpop.f32.mrb[0].mxu0
        %454 = vmatprep.mubr.f32.mxu0 0.0
        %455 = vmatmul.mubr.f32.gmra.mrb[0].mxu0 %v383
        %v456 = vpop.f32.mrb[0].mxu0
        %v457 = vadd.f32 0.0, %v456
        %v458 = vpop.f32.mrb[0].mxu0
        %459 = vdwg.mxu0
        %v460 = vld [vmem:[%s6] sm:$0x1]
        %v461 = vlaneseq
        %v462 = vshrl.u32 %v461, 7
        %v463 = vsub.s32 0, %v462
        %v464 = vrot.slane %v460, %v463
        %v465 = vadd.f32 %v452, %v464
        %v466 = vadd.f32 %v457, %v464
        %v467 = vld [vmem:[%s6 + $0x1] sm:$0x1]
        %v468 = vlaneseq
        %v469 = vshrl.u32 %v468, 7
        %v470 = vsub.s32 0, %v469
        %v471 = vrot.slane %v467, %v470
        %473 = vrot.lane.b32.xlu0 %v471, 32
        %v474 = vpop.permute.xlu0 %473
        %v476 = vadd.f32 %v452, %v474
        %v477 = vadd.f32 %v457, %v474
        %v478 = vld [vmem:[%s6 + $0x2] sm:$0x1]
        %v479 = vlaneseq
        %v480 = vshrl.u32 %v479, 7
        %v481 = vsub.s32 0, %v480
        %v482 = vrot.slane %v478, %v481
        %484 = vrot.lane.b32.xlu0 %v482, 64
        %v485 = vpop.permute.xlu0 %484
        %v487 = vadd.f32 %v452, %v485
        %v488 = vadd.f32 %v457, %v485
        %v489 = vld [vmem:[#allocation5] sm:$0xff]
        %v490 = vld [vmem:[#allocation5 + $0x8] sm:$0xff]
        %493 = vrot.lane.b32.xlu0 %v476, 96
        %v494 = vpop.permute.xlu0 %493
        %495 = vrot.lane.b32.xlu0 %v477, 96
        %v496 = vpop.permute.xlu0 %495
        %vm497 = vcmask 64512
        %v499 = vsel %vm497, %v465, 0
        %v502 = vsel %vm497, %v466, 0
        %v504 = vsel %vm497, %v494, 0
        %v506 = vsel %vm497, %v496, 0
        %508 = vmatprep.subr.mxu0 0.0
        %509 = vmatpush1.xpose.msra.mxu0 %v504
        %510 = vmatprep.subr.mxu0 0.0
        %511 = vmatpush1.xpose.msra.mxu0 %v506
        %512 = vmatprep.subr.mxu0 0.0
        %513 = vmatpush1.xpose.msra.mxu0 0.0
        %514 = vmatprep.subr.mxu0 0.0
        %515 = vmatpush1.xpose.msra.mxu0 0.0
        %516 = vmatprep.subr.mxu0 0.0
        %517 = vmatpush1.xpose.msra.mxu0 0.0
        %518 = vmatprep.subr.mxu0 0.0
        %519 = vmatpush1.xpose.msra.mxu0 0.0
        %520 = vmatprep.subr.mxu0 0.0
        %521 = vmatpush1.xpose.msra.mxu0 0.0
        %522 = vmatprep.subr.mxu0 0.0
        %523 = vmatpush1.xpose.msra.mxu0 0.0
        %524 = vmatprep.subr.mxu0 0.0
        %525 = vmatpush1.xpose.msra.mxu0 0.0
        %526 = vmatprep.subr.mxu0 0.0
        %527 = vmatpush1.xpose.msra.mxu0 0.0
        %528 = vmatprep.subr.mxu0 0.0
        %529 = vmatpush1.xpose.msra.mxu0 0.0
        %530 = vmatprep.subr.mxu0 0.0
        %531 = vmatpush1.xpose.msra.mxu0 0.0
        %532 = vmatprep.subr.mxu0 0.0
        %533 = vmatpush1.xpose.msra.mxu0 0.0
        %534 = vmatprep.subr.mxu0 0.0
        %535 = vmatpush1.xpose.msra.mxu0 0.0
        %536 = vmatprep.subr.mxu0 0.0
        %537 = vmatpush1.xpose.msra.mxu0 0.0
        %538 = vmatprep.subr.mxu0 0.0
        %539 = vmatpush1.xpose.msra.mxu0 0.0
        %540 = vmatprep.subr.mxu0 0.0
        %541 = vmatpush1.xpose.msra.mxu0 0.0
        %542 = vmatprep.subr.mxu0 0.0
        %543 = vmatpush1.xpose.msra.mxu0 0.0
        %544 = vmatprep.subr.mxu0 0.0
        %545 = vmatpush1.xpose.msra.mxu0 0.0
        %546 = vmatprep.subr.mxu0 0.0
        %547 = vmatpush1.xpose.msra.mxu0 0.0
        %548 = vmatprep.subr.mxu0 0.0
        %549 = vmatpush1.xpose.msra.mxu0 0.0
        %550 = vmatprep.subr.mxu0 0.0
        %551 = vmatpush1.xpose.msra.mxu0 0.0
        %552 = vmatprep.subr.mxu0 0.0
        %553 = vmatpush1.xpose.msra.mxu0 0.0
        %554 = vmatprep.subr.mxu0 0.0
        %555 = vmatpush1.xpose.msra.mxu0 0.0
        %556 = vmatprep.subr.mxu0 0.0
        %557 = vmatpush1.xpose.msra.mxu0 0.0
        %558 = vmatprep.subr.mxu0 0.0
        %559 = vmatpush1.xpose.msra.mxu0 0.0
        %560 = vmatprep.subr.mxu0 0.0
        %561 = vmatpush1.xpose.msra.mxu0 0.0
        %562 = vmatprep.subr.mxu0 0.0
        %563 = vmatpush1.xpose.msra.mxu0 0.0
        %564 = vmatprep.subr.mxu0 0.0
        %565 = vmatpush1.xpose.msra.mxu0 0.0
        %566 = vmatprep.subr.mxu0 0.0
        %567 = vmatpush1.xpose.msra.mxu0 0.0
        %568 = vmatprep.subr.mxu0 0.0
        %569 = vmatpush1.xpose.msra.mxu0 0.0
        %570 = vmatprep.subr.mxu0 0.0
        %571 = vmatpush1.xpose.msra.mxu0 0.0
        %572 = vmatprep.mubr.f32.mxu0 0.0
        %573 = vmatmul.mubr.f32.gmra.mrb[0].mxu0 %v499
        %v574 = vpop.f32.mrb[0].mxu0
        %v575 = vadd.f32 0.0, %v574
        %v576 = vpop.f32.mrb[0].mxu0
        %577 = vmatprep.mubr.f32.mxu0 0.0
        %578 = vmatmul.mubr.f32.gmra.mrb[0].mxu0 %v502
        %v579 = vpop.f32.mrb[0].mxu0
        %v580 = vadd.f32 0.0, %v579
        %v581 = vpop.f32.mrb[0].mxu0
        %582 = vdwg.mxu0
        %v583 = vmul.f32 %v575, 0.35355338
        %v584 = vmul.f32 %v580, 0.35355338
        %v585 = vadd.f32 %v583, %v489
        %v586 = vadd.f32 %v584, %v490
        %vm587 = vcmask 130048
        %v588 = vsel %vm587, %v585, -inf
        %589 = vmax.xlane.f32.xlu0 %v588
        %v590 = vpop.xlane.xlu0 %589
        %v591 = vsel %vm587, %v586, -inf
        %592 = vmax.xlane.f32.xlu0 %v591
        %v593 = vpop.xlane.xlu0 %592
        %v594 = vsub.f32 %v585, %v590
        %v595 = vsub.f32 %v586, %v593
        %v596 = vmul.f32 %v594, 1.442695
        %v597 = vpow.pop %v596
        %v598 = vmul.f32 %v595, 1.442695
        %v599 = vpow.pop %v598
        %v600 = vsel %vm587, %v597, 0.0
        %601 = vadd.xlane.f32.xlu0 %v600
        %v602 = vpop.xlane.xlu0 %601
        %v603 = vsel %vm587, %v599, 0.0
        %604 = vadd.xlane.f32.xlu0 %v603
        %v605 = vpop.xlane.xlu0 %604
        %v606 = vrcp.pop %v602
        %v607 = vrcp.pop %v605
        %v608 = vmul.f32 %v602, %v606
        %v609 = vmul.f32 %v605, %v607
        %v610 = vsub.f32 2.0, %v608
        %v611 = vsub.f32 2.0, %v609
        %v612 = vmul.f32 %v606, %v610
        %v613 = vmul.f32 %v607, %v611
        %v614 = vmul.f32 %v597, %v612
        %v615 = vmul.f32 %v599, %v613
        %618 = vrot.lane.b32.xlu0 %v487, 64
        %v619 = vpop.permute.xlu0 %618
        %620 = vrot.lane.b32.xlu0 %v488, 64
        %v621 = vpop.permute.xlu0 %620
        %v625 = vsel %vm587, %v614, 0
        %v628 = vsel %vm587, %v615, 0
        %630 = vmatprep.subr.mxu0 0.0
        %631 = vmatpush1.msra.mxu0 %v619
        %632 = vmatprep.subr.mxu0 0.0
        %633 = vmatpush1.msra.mxu0 %v621
        %634 = vmatprep.subr.mxu0 0.0
        %635 = vmatpush1.msra.mxu0 0.0
        %636 = vmatprep.subr.mxu0 0.0
        %637 = vmatpush1.msra.mxu0 0.0
        %638 = vmatprep.subr.mxu0 0.0
        %639 = vmatpush1.msra.mxu0 0.0
        %640 = vmatprep.subr.mxu0 0.0
        %641 = vmatpush1.msra.mxu0 0.0
        %642 = vmatprep.subr.mxu0 0.0
        %643 = vmatpush1.msra.mxu0 0.0
        %644 = vmatprep.subr.mxu0 0.0
        %645 = vmatpush1.msra.mxu0 0.0
        %646 = vmatprep.subr.mxu0 0.0
        %647 = vmatpush1.msra.mxu0 0.0
        %648 = vmatprep.subr.mxu0 0.0
        %649 = vmatpush1.msra.mxu0 0.0
        %650 = vmatprep.subr.mxu0 0.0
        %651 = vmatpush1.msra.mxu0 0.0
        %652 = vmatprep.subr.mxu0 0.0
        %653 = vmatpush1.msra.mxu0 0.0
        %654 = vmatprep.subr.mxu0 0.0
        %655 = vmatpush1.msra.mxu0 0.0
        %656 = vmatprep.subr.mxu0 0.0
        %657 = vmatpush1.msra.mxu0 0.0
        %658 = vmatprep.subr.mxu0 0.0
        %659 = vmatpush1.msra.mxu0 0.0
        %660 = vmatprep.subr.mxu0 0.0
        %661 = vmatpush1.msra.mxu0 0.0
        %662 = vmatprep.subr.mxu0 0.0
        %663 = vmatpush1.msra.mxu0 0.0
        %664 = vmatprep.subr.mxu0 0.0
        %665 = vmatpush1.msra.mxu0 0.0
        %666 = vmatprep.subr.mxu0 0.0
        %667 = vmatpush1.msra.mxu0 0.0
        %668 = vmatprep.subr.mxu0 0.0
        %669 = vmatpush1.msra.mxu0 0.0
        %670 = vmatprep.subr.mxu0 0.0
        %671 = vmatpush1.msra.mxu0 0.0
        %672 = vmatprep.subr.mxu0 0.0
        %673 = vmatpush1.msra.mxu0 0.0
        %674 = vmatprep.subr.mxu0 0.0
        %675 = vmatpush1.msra.mxu0 0.0
        %676 = vmatprep.subr.mxu0 0.0
        %677 = vmatpush1.msra.mxu0 0.0
        %678 = vmatprep.subr.mxu0 0.0
        %679 = vmatpush1.msra.mxu0 0.0
        %680 = vmatprep.subr.mxu0 0.0
        %681 = vmatpush1.msra.mxu0 0.0
        %682 = vmatprep.subr.mxu0 0.0
        %683 = vmatpush1.msra.mxu0 0.0
        %684 = vmatprep.subr.mxu0 0.0
        %685 = vmatpush1.msra.mxu0 0.0
        %686 = vmatprep.subr.mxu0 0.0
        %687 = vmatpush1.msra.mxu0 0.0
        %688 = vmatprep.subr.mxu0 0.0
        %689 = vmatpush1.msra.mxu0 0.0
        %690 = vmatprep.subr.mxu0 0.0
        %691 = vmatpush1.msra.mxu0 0.0
        %692 = vmatprep.subr.mxu0 0.0
        %693 = vmatpush1.msra.mxu0 0.0
        %694 = vmatprep.mubr.f32.mxu0 0.0
        %695 = vmatmul.mubr.f32.gmra.mrb[0].mxu0 %v625
        %v696 = vpop.f32.mrb[0].mxu0
        %v697 = vadd.f32 0.0, %v696
        %v698 = vpop.f32.mrb[0].mxu0
        %699 = vmatprep.mubr.f32.mxu0 0.0
        %700 = vmatmul.mubr.f32.gmra.mrb[0].mxu0 %v628
        %v701 = vpop.f32.mrb[0].mxu0
        %v702 = vadd.f32 0.0, %v701
        %v703 = vpop.f32.mrb[0].mxu0
        %704 = vdwg.mxu0
        %v705 = vld [vmem:[#allocation8] sm:$0xff]
        %706 = vrot.lane.b32.xlu0 %v465, 120
        %v707 = vpop.permute.xlu0 %706
        %708 = vrot.lane.b32.xlu0 %v466, 120
        %v709 = vpop.permute.xlu0 %708
        %710 = vrot.lane.b32.xlu0 %v476, 88
        %v711 = vpop.permute.xlu0 %710
        %712 = vrot.lane.b32.xlu0 %v477, 88
        %v713 = vpop.permute.xlu0 %712
        %v714 = vsel %vm497, %v707, 0
        %v716 = vsel %vm497, %v709, 0
        %v718 = vsel %vm497, %v711, 0
        %v720 = vsel %vm497, %v713, 0
        %722 = vmatprep.subr.mxu0 0.0
        %723 = vmatpush1.xpose.msra.mxu0 %v718
        %724 = vmatprep.subr.mxu0 0.0
        %725 = vmatpush1.xpose.msra.mxu0 %v720
        %726 = vmatprep.subr.mxu0 0.0
        %727 = vmatpush1.xpose.msra.mxu0 0.0
        %728 = vmatprep.subr.mxu0 0.0
        %729 = vmatpush1.xpose.msra.mxu0 0.0
        %730 = vmatprep.subr.mxu0 0.0
        %731 = vmatpush1.xpose.msra.mxu0 0.0
        %732 = vmatprep.subr.mxu0 0.0
        %733 = vmatpush1.xpose.msra.mxu0 0.0
        %734 = vmatprep.subr.mxu0 0.0
        %735 = vmatpush1.xpose.msra.mxu0 0.0
        %736 = vmatprep.subr.mxu0 0.0
        %737 = vmatpush1.xpose.msra.mxu0 0.0
        %738 = vmatprep.subr.mxu0 0.0
        %739 = vmatpush1.xpose.msra.mxu0 0.0
        %740 = vmatprep.subr.mxu0 0.0
        %741 = vmatpush1.xpose.msra.mxu0 0.0
        %742 = vmatprep.subr.mxu0 0.0
        %743 = vmatpush1.xpose.msra.mxu0 0.0
        %744 = vmatprep.subr.mxu0 0.0
        %745 = vmatpush1.xpose.msra.mxu0 0.0
        %746 = vmatprep.subr.mxu0 0.0
        %747 = vmatpush1.xpose.msra.mxu0 0.0
        %748 = vmatprep.subr.mxu0 0.0
        %749 = vmatpush1.xpose.msra.mxu0 0.0
        %750 = vmatprep.subr.mxu0 0.0
        %751 = vmatpush1.xpose.msra.mxu0 0.0
        %752 = vmatprep.subr.mxu0 0.0
        %753 = vmatpush1.xpose.msra.mxu0 0.0
        %754 = vmatprep.subr.mxu0 0.0
        %755 = vmatpush1.xpose.msra.mxu0 0.0
        %756 = vmatprep.subr.mxu0 0.0
        %757 = vmatpush1.xpose.msra.mxu0 0.0
        %758 = vmatprep.subr.mxu0 0.0
        %759 = vmatpush1.xpose.msra.mxu0 0.0
        %760 = vmatprep.subr.mxu0 0.0
        %761 = vmatpush1.xpose.msra.mxu0 0.0
        %762 = vmatprep.subr.mxu0 0.0
        %763 = vmatpush1.xpose.msra.mxu0 0.0
        %764 = vmatprep.subr.mxu0 0.0
        %765 = vmatpush1.xpose.msra.mxu0 0.0
        %766 = vmatprep.subr.mxu0 0.0
        %767 = vmatpush1.xpose.msra.mxu0 0.0
        %768 = vmatprep.subr.mxu0 0.0
        %769 = vmatpush1.xpose.msra.mxu0 0.0
        %770 = vmatprep.subr.mxu0 0.0
        %771 = vmatpush1.xpose.msra.mxu0 0.0
        %772 = vmatprep.subr.mxu0 0.0
        %773 = vmatpush1.xpose.msra.mxu0 0.0
        %774 = vmatprep.subr.mxu0 0.0
        %775 = vmatpush1.xpose.msra.mxu0 0.0
        %776 = vmatprep.subr.mxu0 0.0
        %777 = vmatpush1.xpose.msra.mxu0 0.0
        %778 = vmatprep.subr.mxu0 0.0
        %779 = vmatpush1.xpose.msra.mxu0 0.0
        %780 = vmatprep.subr.mxu0 0.0
        %781 = vmatpush1.xpose.msra.mxu0 0.0
        %782 = vmatprep.subr.mxu0 0.0
        %783 = vmatpush1.xpose.msra.mxu0 0.0
        %784 = vmatprep.subr.mxu0 0.0
        %785 = vmatpush1.xpose.msra.mxu0 0.0
        %786 = vmatprep.mubr.f32.mxu0 0.0
        %787 = vmatmul.mubr.f32.gmra.mrb[0].mxu0 %v714
        %v788 = vpop.f32.mrb[0].mxu0
        %v789 = vadd.f32 0.0, %v788
        %v790 = vpop.f32.mrb[0].mxu0
        %791 = vmatprep.mubr.f32.mxu0 0.0
        %792 = vmatmul.mubr.f32.gmra.mrb[0].mxu0 %v716
        %v793 = vpop.f32.mrb[0].mxu0
        %v794 = vadd.f32 0.0, %v793
        %v795 = vpop.f32.mrb[0].mxu0
        %796 = vdwg.mxu0
        %v797 = vmul.f32 %v789, 0.35355338
        %v798 = vmul.f32 %v794, 0.35355338
        %v799 = vadd.f32 %v797, %v489
        %v800 = vadd.f32 %v798, %v490
        %v801 = vsel %vm587, %v799, -inf
        %802 = vmax.xlane.f32.xlu0 %v801
        %v803 = vpop.xlane.xlu0 %802
        %v804 = vsel %vm587, %v800, -inf
        %805 = vmax.xlane.f32.xlu0 %v804
        %v806 = vpop.xlane.xlu0 %805
        %v807 = vsub.f32 %v799, %v803
        %v808 = vsub.f32 %v800, %v806
        %v809 = vmul.f32 %v807, 1.442695
        %v810 = vpow.pop %v809
        %v811 = vmul.f32 %v808, 1.442695
        %v812 = vpow.pop %v811
        %v813 = vsel %vm587, %v810, 0.0
        %814 = vadd.xlane.f32.xlu0 %v813
        %v815 = vpop.xlane.xlu0 %814
        %v816 = vsel %vm587, %v812, 0.0
        %817 = vadd.xlane.f32.xlu0 %v816
        %v818 = vpop.xlane.xlu0 %817
        %v819 = vrcp.pop %v815
        %v820 = vrcp.pop %v818
        %v821 = vmul.f32 %v815, %v819
        %v822 = vmul.f32 %v818, %v820
        %v823 = vsub.f32 2.0, %v821
        %v824 = vsub.f32 2.0, %v822
        %v825 = vmul.f32 %v819, %v823
        %v826 = vmul.f32 %v820, %v824
        %v827 = vmul.f32 %v810, %v825
        %v828 = vmul.f32 %v812, %v826
        %829 = vrot.lane.b32.xlu0 %v487, 56
        %v830 = vpop.permute.xlu0 %829
        %831 = vrot.lane.b32.xlu0 %v488, 56
        %v832 = vpop.permute.xlu0 %831
        %v836 = vsel %vm587, %v827, 0
        %v839 = vsel %vm587, %v828, 0
        %841 = vmatprep.subr.mxu0 0.0
        %842 = vmatpush1.msra.mxu0 %v830
        %843 = vmatprep.subr.mxu0 0.0
        %844 = vmatpush1.msra.mxu0 %v832
        %845 = vmatprep.subr.mxu0 0.0
        %846 = vmatpush1.msra.mxu0 0.0
        %847 = vmatprep.subr.mxu0 0.0
        %848 = vmatpush1.msra.mxu0 0.0
        %849 = vmatprep.subr.mxu0 0.0
        %850 = vmatpush1.msra.mxu0 0.0
        %851 = vmatprep.subr.mxu0 0.0
        %852 = vmatpush1.msra.mxu0 0.0
        %853 = vmatprep.subr.mxu0 0.0
        %854 = vmatpush1.msra.mxu0 0.0
        %855 = vmatprep.subr.mxu0 0.0
        %856 = vmatpush1.msra.mxu0 0.0
        %857 = vmatprep.subr.mxu0 0.0
        %858 = vmatpush1.msra.mxu0 0.0
        %859 = vmatprep.subr.mxu0 0.0
        %860 = vmatpush1.msra.mxu0 0.0
        %861 = vmatprep.subr.mxu0 0.0
        %862 = vmatpush1.msra.mxu0 0.0
        %863 = vmatprep.subr.mxu0 0.0
        %864 = vmatpush1.msra.mxu0 0.0
        %865 = vmatprep.subr.mxu0 0.0
        %866 = vmatpush1.msra.mxu0 0.0
        %867 = vmatprep.subr.mxu0 0.0
        %868 = vmatpush1.msra.mxu0 0.0
        %869 = vmatprep.subr.mxu0 0.0
        %870 = vmatpush1.msra.mxu0 0.0
        %871 = vmatprep.subr.mxu0 0.0
        %872 = vmatpush1.msra.mxu0 0.0
        %873 = vmatprep.subr.mxu0 0.0
        %874 = vmatpush1.msra.mxu0 0.0
        %875 = vmatprep.subr.mxu0 0.0
        %876 = vmatpush1.msra.mxu0 0.0
        %877 = vmatprep.subr.mxu0 0.0
        %878 = vmatpush1.msra.mxu0 0.0
        %879 = vmatprep.subr.mxu0 0.0
        %880 = vmatpush1.msra.mxu0 0.0
        %881 = vmatprep.subr.mxu0 0.0
        %882 = vmatpush1.msra.mxu0 0.0
        %883 = vmatprep.subr.mxu0 0.0
        %884 = vmatpush1.msra.mxu0 0.0
        %885 = vmatprep.subr.mxu0 0.0
        %886 = vmatpush1.msra.mxu0 0.0
        %887 = vmatprep.subr.mxu0 0.0
        %888 = vmatpush1.msra.mxu0 0.0
        %889 = vmatprep.subr.mxu0 0.0
        %890 = vmatpush1.msra.mxu0 0.0
        %891 = vmatprep.subr.mxu0 0.0
        %892 = vmatpush1.msra.mxu0 0.0
        %893 = vmatprep.subr.mxu0 0.0
        %894 = vmatpush1.msra.mxu0 0.0
        %895 = vmatprep.subr.mxu0 0.0
        %896 = vmatpush1.msra.mxu0 0.0
        %897 = vmatprep.subr.mxu0 0.0
        %898 = vmatpush1.msra.mxu0 0.0
        %899 = vmatprep.subr.mxu0 0.0
        %900 = vmatpush1.msra.mxu0 0.0
        %901 = vmatprep.subr.mxu0 0.0
        %902 = vmatpush1.msra.mxu0 0.0
        %903 = vmatprep.subr.mxu0 0.0
        %904 = vmatpush1.msra.mxu0 0.0
        %905 = vmatprep.mubr.f32.mxu0 0.0
        %906 = vmatmul.mubr.f32.gmra.mrb[0].mxu0 %v836
        %v907 = vpop.f32.mrb[0].mxu0
        %v908 = vadd.f32 0.0, %v907
        %v909 = vpop.f32.mrb[0].mxu0
        %910 = vmatprep.mubr.f32.mxu0 0.0
        %911 = vmatmul.mubr.f32.gmra.mrb[0].mxu0 %v839
        %v912 = vpop.f32.mrb[0].mxu0
        %v913 = vadd.f32 0.0, %v912
        %v914 = vpop.f32.mrb[0].mxu0
        %915 = vdwg.mxu0
        %v916 = vld [vmem:[#allocation8 + $0x8] sm:$0xff]
        %v918 = vsel %vm497, %v908, 0
        %v921 = vsel %vm497, %v913, 0
        %923 = vmatprep.subr.mxu0 0.0
        %924 = vmatpush1.msra.mxu0 %v916
        %925 = vmatprep.subr.mxu0 0.0
        %926 = vmatpush1.msra.mxu0 0.0
        %927 = vmatprep.subr.mxu0 0.0
        %928 = vmatpush1.msra.mxu0 0.0
        %929 = vmatprep.subr.mxu0 0.0
        %930 = vmatpush1.msra.mxu0 0.0
        %931 = vmatprep.subr.mxu0 0.0
        %932 = vmatpush1.msra.mxu0 0.0
        %933 = vmatprep.subr.mxu0 0.0
        %934 = vmatpush1.msra.mxu0 0.0
        %935 = vmatprep.subr.mxu0 0.0
        %936 = vmatpush1.msra.mxu0 0.0
        %937 = vmatprep.subr.mxu0 0.0
        %938 = vmatpush1.msra.mxu0 0.0
        %939 = vmatprep.subr.mxu0 0.0
        %940 = vmatpush1.msra.mxu0 0.0
        %941 = vmatprep.subr.mxu0 0.0
        %942 = vmatpush1.msra.mxu0 0.0
        %943 = vmatprep.subr.mxu0 0.0
        %944 = vmatpush1.msra.mxu0 0.0
        %945 = vmatprep.subr.mxu0 0.0
        %946 = vmatpush1.msra.mxu0 0.0
        %947 = vmatprep.subr.mxu0 0.0
        %948 = vmatpush1.msra.mxu0 0.0
        %949 = vmatprep.subr.mxu0 0.0
        %950 = vmatpush1.msra.mxu0 0.0
        %951 = vmatprep.subr.mxu0 0.0
        %952 = vmatpush1.msra.mxu0 0.0
        %953 = vmatprep.subr.mxu0 0.0
        %954 = vmatpush1.msra.mxu0 0.0
        %955 = vmatprep.subr.mxu0 0.0
        %956 = vmatpush1.msra.mxu0 0.0
        %957 = vmatprep.subr.mxu0 0.0
        %958 = vmatpush1.msra.mxu0 0.0
        %959 = vmatprep.subr.mxu0 0.0
        %960 = vmatpush1.msra.mxu0 0.0
        %961 = vmatprep.subr.mxu0 0.0
        %962 = vmatpush1.msra.mxu0 0.0
        %963 = vmatprep.subr.mxu0 0.0
        %964 = vmatpush1.msra.mxu0 0.0
        %965 = vmatprep.subr.mxu0 0.0
        %966 = vmatpush1.msra.mxu0 0.0
        %967 = vmatprep.subr.mxu0 0.0
        %968 = vmatpush1.msra.mxu0 0.0
        %969 = vmatprep.subr.mxu0 0.0
        %970 = vmatpush1.msra.mxu0 0.0
        %971 = vmatprep.subr.mxu0 0.0
        %972 = vmatpush1.msra.mxu0 0.0
        %973 = vmatprep.subr.mxu0 0.0
        %974 = vmatpush1.msra.mxu0 0.0
        %975 = vmatprep.subr.mxu0 0.0
        %976 = vmatpush1.msra.mxu0 0.0
        %977 = vmatprep.subr.mxu0 0.0
        %978 = vmatpush1.msra.mxu0 0.0
        %979 = vmatprep.subr.mxu0 0.0
        %980 = vmatpush1.msra.mxu0 0.0
        %981 = vmatprep.subr.mxu0 0.0
        %982 = vmatpush1.msra.mxu0 0.0
        %983 = vmatprep.subr.mxu0 0.0
        %984 = vmatpush1.msra.mxu0 0.0
        %985 = vmatprep.subr.mxu0 0.0
        %986 = vmatpush1.msra.mxu0 0.0
        %987 = vmatprep.mubr.f32.mxu0 0.0
        %988 = vmatmul.mubr.f32.gmra.mrb[0].mxu0 %v918
        %v989 = vpop.f32.mrb[0].mxu0
        %v990 = vadd.f32 0.0, %v989
        %v991 = vpop.f32.mrb[0].mxu0
        %992 = vmatprep.mubr.f32.mxu0 0.0
        %993 = vmatmul.mubr.f32.gmra.mrb[0].mxu0 %v921
        %v994 = vpop.f32.mrb[0].mxu0
        %v995 = vadd.f32 0.0, %v994
        %v996 = vpop.f32.mrb[0].mxu0
        %997 = vdwg.mxu0
        %v999 = vsel %vm497, %v697, 0
        %v1002 = vsel %vm497, %v702, 0
        %1004 = vmatprep.subr.mxu0 0.0
        %1005 = vmatpush1.msra.mxu0 %v705
        %1006 = vmatprep.subr.mxu0 0.0
        %1007 = vmatpush1.msra.mxu0 0.0
        %1008 = vmatprep.subr.mxu0 0.0
        %1009 = vmatpush1.msra.mxu0 0.0
        %1010 = vmatprep.subr.mxu0 0.0
        %1011 = vmatpush1.msra.mxu0 0.0
        %1012 = vmatprep.subr.mxu0 0.0
        %1013 = vmatpush1.msra.mxu0 0.0
        %1014 = vmatprep.subr.mxu0 0.0
        %1015 = vmatpush1.msra.mxu0 0.0
        %1016 = vmatprep.subr.mxu0 0.0
        %1017 = vmatpush1.msra.mxu0 0.0
        %1018 = vmatprep.subr.mxu0 0.0
        %1019 = vmatpush1.msra.mxu0 0.0
        %1020 = vmatprep.subr.mxu0 0.0
        %1021 = vmatpush1.msra.mxu0 0.0
        %1022 = vmatprep.subr.mxu0 0.0
        %1023 = vmatpush1.msra.mxu0 0.0
        %1024 = vmatprep.subr.mxu0 0.0
        %1025 = vmatpush1.msra.mxu0 0.0
        %1026 = vmatprep.subr.mxu0 0.0
        %1027 = vmatpush1.msra.mxu0 0.0
        %1028 = vmatprep.subr.mxu0 0.0
        %1029 = vmatpush1.msra.mxu0 0.0
        %1030 = vmatprep.subr.mxu0 0.0
        %1031 = vmatpush1.msra.mxu0 0.0
        %1032 = vmatprep.subr.mxu0 0.0
        %1033 = vmatpush1.msra.mxu0 0.0
        %1034 = vmatprep.subr.mxu0 0.0
        %1035 = vmatpush1.msra.mxu0 0.0
        %1036 = vmatprep.subr.mxu0 0.0
        %1037 = vmatpush1.msra.mxu0 0.0
        %1038 = vmatprep.subr.mxu0 0.0
        %1039 = vmatpush1.msra.mxu0 0.0
        %1040 = vmatprep.subr.mxu0 0.0
        %1041 = vmatpush1.msra.mxu0 0.0
        %1042 = vmatprep.subr.mxu0 0.0
        %1043 = vmatpush1.msra.mxu0 0.0
        %1044 = vmatprep.subr.mxu0 0.0
        %1045 = vmatpush1.msra.mxu0 0.0
        %1046 = vmatprep.subr.mxu0 0.0
        %1047 = vmatpush1.msra.mxu0 0.0
        %1048 = vmatprep.subr.mxu0 0.0
        %1049 = vmatpush1.msra.mxu0 0.0
        %1050 = vmatprep.subr.mxu0 0.0
        %1051 = vmatpush1.msra.mxu0 0.0
        %1052 = vmatprep.subr.mxu0 0.0
        %1053 = vmatpush1.msra.mxu0 0.0
        %1054 = vmatprep.subr.mxu0 0.0
        %1055 = vmatpush1.msra.mxu0 0.0
        %1056 = vmatprep.subr.mxu0 0.0
        %1057 = vmatpush1.msra.mxu0 0.0
        %1058 = vmatprep.subr.mxu0 0.0
        %1059 = vmatpush1.msra.mxu0 0.0
        %1060 = vmatprep.subr.mxu0 0.0
        %1061 = vmatpush1.msra.mxu0 0.0
        %1062 = vmatprep.subr.mxu0 0.0
        %1063 = vmatpush1.msra.mxu0 0.0
        %1064 = vmatprep.subr.mxu0 0.0
        %1065 = vmatpush1.msra.mxu0 0.0
        %1066 = vmatprep.subr.mxu0 0.0
        %1067 = vmatpush1.msra.mxu0 0.0
        %1068 = vmatprep.mubr.f32.mxu0 0.0
        %1069 = vmatmul.mubr.f32.gmra.mrb[0].mxu0 %v999
        %v1070 = vpop.f32.mrb[0].mxu0
        %v1071 = vadd.f32 %v990, %v1070
        %v1072 = vpop.f32.mrb[0].mxu0
        %1073 = vmatprep.mubr.f32.mxu0 0.0
        %1074 = vmatmul.mubr.f32.gmra.mrb[0].mxu0 %v1002
        %v1075 = vpop.f32.mrb[0].mxu0
        %v1076 = vadd.f32 %v995, %v1075
        %v1077 = vpop.f32.mrb[0].mxu0
        %1078 = vdwg.mxu0
        %1079 = vrot.lane.b32.xlu0 %v465, 112
        %v1080 = vpop.permute.xlu0 %1079
        %1081 = vrot.lane.b32.xlu0 %v466, 112
        %v1082 = vpop.permute.xlu0 %1081
        %1083 = vrot.lane.b32.xlu0 %v476, 80
        %v1084 = vpop.permute.xlu0 %1083
        %1085 = vrot.lane.b32.xlu0 %v477, 80
        %v1086 = vpop.permute.xlu0 %1085
        %v1087 = vsel %vm497, %v1080, 0
        %v1089 = vsel %vm497, %v1082, 0
        %v1091 = vsel %vm497, %v1084, 0
        %v1093 = vsel %vm497, %v1086, 0
        %1095 = vmatprep.subr.mxu0 0.0
        %1096 = vmatpush1.xpose.msra.mxu0 %v1091
        %1097 = vmatprep.subr.mxu0 0.0
        %1098 = vmatpush1.xpose.msra.mxu0 %v1093
        %1099 = vmatprep.subr.mxu0 0.0
        %1100 = vmatpush1.xpose.msra.mxu0 0.0
        %1101 = vmatprep.subr.mxu0 0.0
        %1102 = vmatpush1.xpose.msra.mxu0 0.0
        %1103 = vmatprep.subr.mxu0 0.0
        %1104 = vmatpush1.xpose.msra.mxu0 0.0
        %1105 = vmatprep.subr.mxu0 0.0
        %1106 = vmatpush1.xpose.msra.mxu0 0.0
        %1107 = vmatprep.subr.mxu0 0.0
        %1108 = vmatpush1.xpose.msra.mxu0 0.0
        %1109 = vmatprep.subr.mxu0 0.0
        %1110 = vmatpush1.xpose.msra.mxu0 0.0
        %1111 = vmatprep.subr.mxu0 0.0
        %1112 = vmatpush1.xpose.msra.mxu0 0.0
        %1113 = vmatprep.subr.mxu0 0.0
        %1114 = vmatpush1.xpose.msra.mxu0 0.0
        %1115 = vmatprep.subr.mxu0 0.0
        %1116 = vmatpush1.xpose.msra.mxu0 0.0
        %1117 = vmatprep.subr.mxu0 0.0
        %1118 = vmatpush1.xpose.msra.mxu0 0.0
        %1119 = vmatprep.subr.mxu0 0.0
        %1120 = vmatpush1.xpose.msra.mxu0 0.0
        %1121 = vmatprep.subr.mxu0 0.0
        %1122 = vmatpush1.xpose.msra.mxu0 0.0
        %1123 = vmatprep.subr.mxu0 0.0
        %1124 = vmatpush1.xpose.msra.mxu0 0.0
        %1125 = vmatprep.subr.mxu0 0.0
        %1126 = vmatpush1.xpose.msra.mxu0 0.0
        %1127 = vmatprep.subr.mxu0 0.0
        %1128 = vmatpush1.xpose.msra.mxu0 0.0
        %1129 = vmatprep.subr.mxu0 0.0
        %1130 = vmatpush1.xpose.msra.mxu0 0.0
        %1131 = vmatprep.subr.mxu0 0.0
        %1132 = vmatpush1.xpose.msra.mxu0 0.0
        %1133 = vmatprep.subr.mxu0 0.0
        %1134 = vmatpush1.xpose.msra.mxu0 0.0
        %1135 = vmatprep.subr.mxu0 0.0
        %1136 = vmatpush1.xpose.msra.mxu0 0.0
        %1137 = vmatprep.subr.mxu0 0.0
        %1138 = vmatpush1.xpose.msra.mxu0 0.0
        %1139 = vmatprep.subr.mxu0 0.0
        %1140 = vmatpush1.xpose.msra.mxu0 0.0
        %1141 = vmatprep.subr.mxu0 0.0
        %1142 = vmatpush1.xpose.msra.mxu0 0.0
        %1143 = vmatprep.subr.mxu0 0.0
        %1144 = vmatpush1.xpose.msra.mxu0 0.0
        %1145 = vmatprep.subr.mxu0 0.0
        %1146 = vmatpush1.xpose.msra.mxu0 0.0
        %1147 = vmatprep.subr.mxu0 0.0
        %1148 = vmatpush1.xpose.msra.mxu0 0.0
        %1149 = vmatprep.subr.mxu0 0.0
        %1150 = vmatpush1.xpose.msra.mxu0 0.0
        %1151 = vmatprep.subr.mxu0 0.0
        %1152 = vmatpush1.xpose.msra.mxu0 0.0
        %1153 = vmatprep.subr.mxu0 0.0
        %1154 = vmatpush1.xpose.msra.mxu0 0.0
        %1155 = vmatprep.subr.mxu0 0.0
        %1156 = vmatpush1.xpose.msra.mxu0 0.0
        %1157 = vmatprep.subr.mxu0 0.0
        %1158 = vmatpush1.xpose.msra.mxu0 0.0
        %1159 = vmatprep.mubr.f32.mxu0 0.0
        %1160 = vmatmul.mubr.f32.gmra.mrb[0].mxu0 %v1087
        %v1161 = vpop.f32.mrb[0].mxu0
        %v1162 = vadd.f32 0.0, %v1161
        %v1163 = vpop.f32.mrb[0].mxu0
        %1164 = vmatprep.mubr.f32.mxu0 0.0
        %1165 = vmatmul.mubr.f32.gmra.mrb[0].mxu0 %v1089
        %v1166 = vpop.f32.mrb[0].mxu0
        %v1167 = vadd.f32 0.0, %v1166
        %v1168 = vpop.f32.mrb[0].mxu0
        %1169 = vdwg.mxu0
        %v1170 = vmul.f32 %v1162, 0.35355338
        %v1171 = vmul.f32 %v1167, 0.35355338
        %v1172 = vadd.f32 %v1170, %v489
        %v1173 = vadd.f32 %v1171, %v490
        %v1174 = vsel %vm587, %v1172, -inf
        %1175 = vmax.xlane.f32.xlu0 %v1174
        %v1176 = vpop.xlane.xlu0 %1175
        %v1177 = vsel %vm587, %v1173, -inf
        %1178 = vmax.xlane.f32.xlu0 %v1177
        %v1179 = vpop.xlane.xlu0 %1178
        %v1180 = vsub.f32 %v1172, %v1176
        %v1181 = vsub.f32 %v1173, %v1179
        %v1182 = vmul.f32 %v1180, 1.442695
        %v1183 = vpow.pop %v1182
        %v1184 = vmul.f32 %v1181, 1.442695
        %v1185 = vpow.pop %v1184
        %v1186 = vsel %vm587, %v1183, 0.0
        %1187 = vadd.xlane.f32.xlu0 %v1186
        %v1188 = vpop.xlane.xlu0 %1187
        %v1189 = vsel %vm587, %v1185, 0.0
        %1190 = vadd.xlane.f32.xlu0 %v1189
        %v1191 = vpop.xlane.xlu0 %1190
        %v1192 = vrcp.pop %v1188
        %v1193 = vrcp.pop %v1191
        %v1194 = vmul.f32 %v1188, %v1192
        %v1195 = vmul.f32 %v1191, %v1193
        %v1196 = vsub.f32 2.0, %v1194
        %v1197 = vsub.f32 2.0, %v1195
        %v1198 = vmul.f32 %v1192, %v1196
        %v1199 = vmul.f32 %v1193, %v1197
        %v1200 = vmul.f32 %v1183, %v1198
        %v1201 = vmul.f32 %v1185, %v1199
        %1202 = vrot.lane.b32.xlu0 %v487, 48
        %v1203 = vpop.permute.xlu0 %1202
        %1204 = vrot.lane.b32.xlu0 %v488, 48
        %v1205 = vpop.permute.xlu0 %1204
        %v1209 = vsel %vm587, %v1200, 0
        %v1212 = vsel %vm587, %v1201, 0
        %1214 = vmatprep.subr.mxu0 0.0
        %1215 = vmatpush1.msra.mxu0 %v1203
        %1216 = vmatprep.subr.mxu0 0.0
        %1217 = vmatpush1.msra.mxu0 %v1205
        %1218 = vmatprep.subr.mxu0 0.0
        %1219 = vmatpush1.msra.mxu0 0.0
        %1220 = vmatprep.subr.mxu0 0.0
        %1221 = vmatpush1.msra.mxu0 0.0
        %1222 = vmatprep.subr.mxu0 0.0
        %1223 = vmatpush1.msra.mxu0 0.0
        %1224 = vmatprep.subr.mxu0 0.0
        %1225 = vmatpush1.msra.mxu0 0.0
        %1226 = vmatprep.subr.mxu0 0.0
        %1227 = vmatpush1.msra.mxu0 0.0
        %1228 = vmatprep.subr.mxu0 0.0
        %1229 = vmatpush1.msra.mxu0 0.0
        %1230 = vmatprep.subr.mxu0 0.0
        %1231 = vmatpush1.msra.mxu0 0.0
        %1232 = vmatprep.subr.mxu0 0.0
        %1233 = vmatpush1.msra.mxu0 0.0
        %1234 = vmatprep.subr.mxu0 0.0
        %1235 = vmatpush1.msra.mxu0 0.0
        %1236 = vmatprep.subr.mxu0 0.0
        %1237 = vmatpush1.msra.mxu0 0.0
        %1238 = vmatprep.subr.mxu0 0.0
        %1239 = vmatpush1.msra.mxu0 0.0
        %1240 = vmatprep.subr.mxu0 0.0
        %1241 = vmatpush1.msra.mxu0 0.0
        %1242 = vmatprep.subr.mxu0 0.0
        %1243 = vmatpush1.msra.mxu0 0.0
        %1244 = vmatprep.subr.mxu0 0.0
        %1245 = vmatpush1.msra.mxu0 0.0
        %1246 = vmatprep.subr.mxu0 0.0
        %1247 = vmatpush1.msra.mxu0 0.0
        %1248 = vmatprep.subr.mxu0 0.0
        %1249 = vmatpush1.msra.mxu0 0.0
        %1250 = vmatprep.subr.mxu0 0.0
        %1251 = vmatpush1.msra.mxu0 0.0
        %1252 = vmatprep.subr.mxu0 0.0
        %1253 = vmatpush1.msra.mxu0 0.0
        %1254 = vmatprep.subr.mxu0 0.0
        %1255 = vmatpush1.msra.mxu0 0.0
        %1256 = vmatprep.subr.mxu0 0.0
        %1257 = vmatpush1.msra.mxu0 0.0
        %1258 = vmatprep.subr.mxu0 0.0
        %1259 = vmatpush1.msra.mxu0 0.0
        %1260 = vmatprep.subr.mxu0 0.0
        %1261 = vmatpush1.msra.mxu0 0.0
        %1262 = vmatprep.subr.mxu0 0.0
        %1263 = vmatpush1.msra.mxu0 0.0
        %1264 = vmatprep.subr.mxu0 0.0
        %1265 = vmatpush1.msra.mxu0 0.0
        %1266 = vmatprep.subr.mxu0 0.0
        %1267 = vmatpush1.msra.mxu0 0.0
        %1268 = vmatprep.subr.mxu0 0.0
        %1269 = vmatpush1.msra.mxu0 0.0
        %1270 = vmatprep.subr.mxu0 0.0
        %1271 = vmatpush1.msra.mxu0 0.0
        %1272 = vmatprep.subr.mxu0 0.0
        %1273 = vmatpush1.msra.mxu0 0.0
        %1274 = vmatprep.subr.mxu0 0.0
        %1275 = vmatpush1.msra.mxu0 0.0
        %1276 = vmatprep.subr.mxu0 0.0
        %1277 = vmatpush1.msra.mxu0 0.0
        %1278 = vmatprep.mubr.f32.mxu0 0.0
        %1279 = vmatmul.mubr.f32.gmra.mrb[0].mxu0 %v1209
        %v1280 = vpop.f32.mrb[0].mxu0
        %v1281 = vadd.f32 0.0, %v1280
        %v1282 = vpop.f32.mrb[0].mxu0
        %1283 = vmatprep.mubr.f32.mxu0 0.0
        %1284 = vmatmul.mubr.f32.gmra.mrb[0].mxu0 %v1212
        %v1285 = vpop.f32.mrb[0].mxu0
        %v1286 = vadd.f32 0.0, %v1285
        %v1287 = vpop.f32.mrb[0].mxu0
        %1288 = vdwg.mxu0
        %v1289 = vld [vmem:[#allocation8 + $0x10] sm:$0xff]
        %v1291 = vsel %vm497, %v1281, 0
        %v1294 = vsel %vm497, %v1286, 0
        %1296 = vmatprep.subr.mxu0 0.0
        %1297 = vmatpush1.msra.mxu0 %v1289
        %1298 = vmatprep.subr.mxu0 0.0
        %1299 = vmatpush1.msra.mxu0 0.0
        %1300 = vmatprep.subr.mxu0 0.0
        %1301 = vmatpush1.msra.mxu0 0.0
        %1302 = vmatprep.subr.mxu0 0.0
        %1303 = vmatpush1.msra.mxu0 0.0
        %1304 = vmatprep.subr.mxu0 0.0
        %1305 = vmatpush1.msra.mxu0 0.0
        %1306 = vmatprep.subr.mxu0 0.0
        %1307 = vmatpush1.msra.mxu0 0.0
        %1308 = vmatprep.subr.mxu0 0.0
        %1309 = vmatpush1.msra.mxu0 0.0
        %1310 = vmatprep.subr.mxu0 0.0
        %1311 = vmatpush1.msra.mxu0 0.0
        %1312 = vmatprep.subr.mxu0 0.0
        %1313 = vmatpush1.msra.mxu0 0.0
        %1314 = vmatprep.subr.mxu0 0.0
        %1315 = vmatpush1.msra.mxu0 0.0
        %1316 = vmatprep.subr.mxu0 0.0
        %1317 = vmatpush1.msra.mxu0 0.0
        %1318 = vmatprep.subr.mxu0 0.0
        %1319 = vmatpush1.msra.mxu0 0.0
        %1320 = vmatprep.subr.mxu0 0.0
        %1321 = vmatpush1.msra.mxu0 0.0
        %1322 = vmatprep.subr.mxu0 0.0
        %1323 = vmatpush1.msra.mxu0 0.0
        %1324 = vmatprep.subr.mxu0 0.0
        %1325 = vmatpush1.msra.mxu0 0.0
        %1326 = vmatprep.subr.mxu0 0.0
        %1327 = vmatpush1.msra.mxu0 0.0
        %1328 = vmatprep.subr.mxu0 0.0
        %1329 = vmatpush1.msra.mxu0 0.0
        %1330 = vmatprep.subr.mxu0 0.0
        %1331 = vmatpush1.msra.mxu0 0.0
        %1332 = vmatprep.subr.mxu0 0.0
        %1333 = vmatpush1.msra.mxu0 0.0
        %1334 = vmatprep.subr.mxu0 0.0
        %1335 = vmatpush1.msra.mxu0 0.0
        %1336 = vmatprep.subr.mxu0 0.0
        %1337 = vmatpush1.msra.mxu0 0.0
        %1338 = vmatprep.subr.mxu0 0.0
        %1339 = vmatpush1.msra.mxu0 0.0
        %1340 = vmatprep.subr.mxu0 0.0
        %1341 = vmatpush1.msra.mxu0 0.0
        %1342 = vmatprep.subr.mxu0 0.0
        %1343 = vmatpush1.msra.mxu0 0.0
        %1344 = vmatprep.subr.mxu0 0.0
        %1345 = vmatpush1.msra.mxu0 0.0
        %1346 = vmatprep.subr.mxu0 0.0
        %1347 = vmatpush1.msra.mxu0 0.0
        %1348 = vmatprep.subr.mxu0 0.0
        %1349 = vmatpush1.msra.mxu0 0.0
        %1350 = vmatprep.subr.mxu0 0.0
        %1351 = vmatpush1.msra.mxu0 0.0
        %1352 = vmatprep.subr.mxu0 0.0
        %1353 = vmatpush1.msra.mxu0 0.0
        %1354 = vmatprep.subr.mxu0 0.0
        %1355 = vmatpush1.msra.mxu0 0.0
        %1356 = vmatprep.subr.mxu0 0.0
        %1357 = vmatpush1.msra.mxu0 0.0
        %1358 = vmatprep.subr.mxu0 0.0
        %1359 = vmatpush1.msra.mxu0 0.0
        %1360 = vmatprep.mubr.f32.mxu0 0.0
        %1361 = vmatmul.mubr.f32.gmra.mrb[0].mxu0 %v1291
        %v1362 = vpop.f32.mrb[0].mxu0
        %v1363 = vadd.f32 0.0, %v1362
        %v1364 = vpop.f32.mrb[0].mxu0
        %1365 = vmatprep.mubr.f32.mxu0 0.0
        %1366 = vmatmul.mubr.f32.gmra.mrb[0].mxu0 %v1294
        %v1367 = vpop.f32.mrb[0].mxu0
        %v1368 = vadd.f32 0.0, %v1367
        %v1369 = vpop.f32.mrb[0].mxu0
        %1370 = vdwg.mxu0
        %v1371 = vadd.f32 %v1071, %v1363
        %v1372 = vadd.f32 %v1076, %v1368
        %1373 = vrot.lane.b32.xlu0 %v465, 104
        %v1374 = vpop.permute.xlu0 %1373
        %1375 = vrot.lane.b32.xlu0 %v466, 104
        %v1376 = vpop.permute.xlu0 %1375
        %1377 = vrot.lane.b32.xlu0 %v476, 72
        %v1378 = vpop.permute.xlu0 %1377
        %1379 = vrot.lane.b32.xlu0 %v477, 72
        %v1380 = vpop.permute.xlu0 %1379
        %v1381 = vsel %vm497, %v1374, 0
        %v1383 = vsel %vm497, %v1376, 0
        %v1385 = vsel %vm497, %v1378, 0
        %v1387 = vsel %vm497, %v1380, 0
        %1389 = vmatprep.subr.mxu0 0.0
        %1390 = vmatpush1.xpose.msra.mxu0 %v1385
        %1391 = vmatprep.subr.mxu0 0.0
        %1392 = vmatpush1.xpose.msra.mxu0 %v1387
        %1393 = vmatprep.subr.mxu0 0.0
        %1394 = vmatpush1.xpose.msra.mxu0 0.0
        %1395 = vmatprep.subr.mxu0 0.0
        %1396 = vmatpush1.xpose.msra.mxu0 0.0
        %1397 = vmatprep.subr.mxu0 0.0
        %1398 = vmatpush1.xpose.msra.mxu0 0.0
        %1399 = vmatprep.subr.mxu0 0.0
        %1400 = vmatpush1.xpose.msra.mxu0 0.0
        %1401 = vmatprep.subr.mxu0 0.0
        %1402 = vmatpush1.xpose.msra.mxu0 0.0
        %1403 = vmatprep.subr.mxu0 0.0
        %1404 = vmatpush1.xpose.msra.mxu0 0.0
        %1405 = vmatprep.subr.mxu0 0.0
        %1406 = vmatpush1.xpose.msra.mxu0 0.0
        %1407 = vmatprep.subr.mxu0 0.0
        %1408 = vmatpush1.xpose.msra.mxu0 0.0
        %1409 = vmatprep.subr.mxu0 0.0
        %1410 = vmatpush1.xpose.msra.mxu0 0.0
        %1411 = vmatprep.subr.mxu0 0.0
        %1412 = vmatpush1.xpose.msra.mxu0 0.0
        %1413 = vmatprep.subr.mxu0 0.0
        %1414 = vmatpush1.xpose.msra.mxu0 0.0
        %1415 = vmatprep.subr.mxu0 0.0
        %1416 = vmatpush1.xpose.msra.mxu0 0.0
        %1417 = vmatprep.subr.mxu0 0.0
        %1418 = vmatpush1.xpose.msra.mxu0 0.0
        %1419 = vmatprep.subr.mxu0 0.0
        %1420 = vmatpush1.xpose.msra.mxu0 0.0
        %1421 = vmatprep.subr.mxu0 0.0
        %1422 = vmatpush1.xpose.msra.mxu0 0.0
        %1423 = vmatprep.subr.mxu0 0.0
        %1424 = vmatpush1.xpose.msra.mxu0 0.0
        %1425 = vmatprep.subr.mxu0 0.0
        %1426 = vmatpush1.xpose.msra.mxu0 0.0
        %1427 = vmatprep.subr.mxu0 0.0
        %1428 = vmatpush1.xpose.msra.mxu0 0.0
        %1429 = vmatprep.subr.mxu0 0.0
        %1430 = vmatpush1.xpose.msra.mxu0 0.0
        %1431 = vmatprep.subr.mxu0 0.0
        %1432 = vmatpush1.xpose.msra.mxu0 0.0
        %1433 = vmatprep.subr.mxu0 0.0
        %1434 = vmatpush1.xpose.msra.mxu0 0.0
        %1435 = vmatprep.subr.mxu0 0.0
        %1436 = vmatpush1.xpose.msra.mxu0 0.0
        %1437 = vmatprep.subr.mxu0 0.0
        %1438 = vmatpush1.xpose.msra.mxu0 0.0
        %1439 = vmatprep.subr.mxu0 0.0
        %1440 = vmatpush1.xpose.msra.mxu0 0.0
        %1441 = vmatprep.subr.mxu0 0.0
        %1442 = vmatpush1.xpose.msra.mxu0 0.0
        %1443 = vmatprep.subr.mxu0 0.0
        %1444 = vmatpush1.xpose.msra.mxu0 0.0
        %1445 = vmatprep.subr.mxu0 0.0
        %1446 = vmatpush1.xpose.msra.mxu0 0.0
        %1447 = vmatprep.subr.mxu0 0.0
        %1448 = vmatpush1.xpose.msra.mxu0 0.0
        %1449 = vmatprep.subr.mxu0 0.0
        %1450 = vmatpush1.xpose.msra.mxu0 0.0
        %1451 = vmatprep.subr.mxu0 0.0
        %1452 = vmatpush1.xpose.msra.mxu0 0.0
        %1453 = vmatprep.mubr.f32.mxu0 0.0
        %1454 = vmatmul.mubr.f32.gmra.mrb[0].mxu0 %v1381
        %v1455 = vpop.f32.mrb[0].mxu0
        %v1456 = vadd.f32 0.0, %v1455
        %v1457 = vpop.f32.mrb[0].mxu0
        %1458 = vmatprep.mubr.f32.mxu0 0.0
        %1459 = vmatmul.mubr.f32.gmra.mrb[0].mxu0 %v1383
        %v1460 = vpop.f32.mrb[0].mxu0
        %v1461 = vadd.f32 0.0, %v1460
        %v1462 = vpop.f32.mrb[0].mxu0
        %1463 = vdwg.mxu0
        %v1464 = vmul.f32 %v1456, 0.35355338
        %v1465 = vmul.f32 %v1461, 0.35355338
        %v1466 = vadd.f32 %v1464, %v489
        %v1467 = vadd.f32 %v1465, %v490
        %v1468 = vsel %vm587, %v1466, -inf
        %1469 = vmax.xlane.f32.xlu0 %v1468
        %v1470 = vpop.xlane.xlu0 %1469
        %v1471 = vsel %vm587, %v1467, -inf
        %1472 = vmax.xlane.f32.xlu0 %v1471
        %v1473 = vpop.xlane.xlu0 %1472
        %v1474 = vsub.f32 %v1466, %v1470
        %v1475 = vsub.f32 %v1467, %v1473
        %v1476 = vmul.f32 %v1474, 1.442695
        %v1477 = vpow.pop %v1476
        %v1478 = vmul.f32 %v1475, 1.442695
        %v1479 = vpow.pop %v1478
        %v1480 = vsel %vm587, %v1477, 0.0
        %1481 = vadd.xlane.f32.xlu0 %v1480
        %v1482 = vpop.xlane.xlu0 %1481
        %v1483 = vsel %vm587, %v1479, 0.0
        %1484 = vadd.xlane.f32.xlu0 %v1483
        %v1485 = vpop.xlane.xlu0 %1484
        %v1486 = vrcp.pop %v1482
        %v1487 = vrcp.pop %v1485
        %v1488 = vmul.f32 %v1482, %v1486
        %v1489 = vmul.f32 %v1485, %v1487
        %v1490 = vsub.f32 2.0, %v1488
        %v1491 = vsub.f32 2.0, %v1489
        %v1492 = vmul.f32 %v1486, %v1490
        %v1493 = vmul.f32 %v1487, %v1491
        %v1494 = vmul.f32 %v1477, %v1492
        %v1495 = vmul.f32 %v1479, %v1493
        %1496 = vrot.lane.b32.xlu0 %v487, 40
        %v1497 = vpop.permute.xlu0 %1496
        %1498 = vrot.lane.b32.xlu0 %v488, 40
        %v1499 = vpop.permute.xlu0 %1498
        %v1503 = vsel %vm587, %v1494, 0
        %v1506 = vsel %vm587, %v1495, 0
        %1508 = vmatprep.subr.mxu0 0.0
        %1509 = vmatpush1.msra.mxu0 %v1497
        %1510 = vmatprep.subr.mxu0 0.0
        %1511 = vmatpush1.msra.mxu0 %v1499
        %1512 = vmatprep.subr.mxu0 0.0
        %1513 = vmatpush1.msra.mxu0 0.0
        %1514 = vmatprep.subr.mxu0 0.0
        %1515 = vmatpush1.msra.mxu0 0.0
        %1516 = vmatprep.subr.mxu0 0.0
        %1517 = vmatpush1.msra.mxu0 0.0
        %1518 = vmatprep.subr.mxu0 0.0
        %1519 = vmatpush1.msra.mxu0 0.0
        %1520 = vmatprep.subr.mxu0 0.0
        %1521 = vmatpush1.msra.mxu0 0.0
        %1522 = vmatprep.subr.mxu0 0.0
        %1523 = vmatpush1.msra.mxu0 0.0
        %1524 = vmatprep.subr.mxu0 0.0
        %1525 = vmatpush1.msra.mxu0 0.0
        %1526 = vmatprep.subr.mxu0 0.0
        %1527 = vmatpush1.msra.mxu0 0.0
        %1528 = vmatprep.subr.mxu0 0.0
        %1529 = vmatpush1.msra.mxu0 0.0
        %1530 = vmatprep.subr.mxu0 0.0
        %1531 = vmatpush1.msra.mxu0 0.0
        %1532 = vmatprep.subr.mxu0 0.0
        %1533 = vmatpush1.msra.mxu0 0.0
        %1534 = vmatprep.subr.mxu0 0.0
        %1535 = vmatpush1.msra.mxu0 0.0
        %1536 = vmatprep.subr.mxu0 0.0
        %1537 = vmatpush1.msra.mxu0 0.0
        %1538 = vmatprep.subr.mxu0 0.0
        %1539 = vmatpush1.msra.mxu0 0.0
        %1540 = vmatprep.subr.mxu0 0.0
        %1541 = vmatpush1.msra.mxu0 0.0
        %1542 = vmatprep.subr.mxu0 0.0
        %1543 = vmatpush1.msra.mxu0 0.0
        %1544 = vmatprep.subr.mxu0 0.0
        %1545 = vmatpush1.msra.mxu0 0.0
        %1546 = vmatprep.subr.mxu0 0.0
        %1547 = vmatpush1.msra.mxu0 0.0
        %1548 = vmatprep.subr.mxu0 0.0
        %1549 = vmatpush1.msra.mxu0 0.0
        %1550 = vmatprep.subr.mxu0 0.0
        %1551 = vmatpush1.msra.mxu0 0.0
        %1552 = vmatprep.subr.mxu0 0.0
        %1553 = vmatpush1.msra.mxu0 0.0
        %1554 = vmatprep.subr.mxu0 0.0
        %1555 = vmatpush1.msra.mxu0 0.0
        %1556 = vmatprep.subr.mxu0 0.0
        %1557 = vmatpush1.msra.mxu0 0.0
        %1558 = vmatprep.subr.mxu0 0.0
        %1559 = vmatpush1.msra.mxu0 0.0
        %1560 = vmatprep.subr.mxu0 0.0
        %1561 = vmatpush1.msra.mxu0 0.0
        %1562 = vmatprep.subr.mxu0 0.0
        %1563 = vmatpush1.msra.mxu0 0.0
        %1564 = vmatprep.subr.mxu0 0.0
        %1565 = vmatpush1.msra.mxu0 0.0
        %1566 = vmatprep.subr.mxu0 0.0
        %1567 = vmatpush1.msra.mxu0 0.0
        %1568 = vmatprep.subr.mxu0 0.0
        %1569 = vmatpush1.msra.mxu0 0.0
        %1570 = vmatprep.subr.mxu0 0.0
        %1571 = vmatpush1.msra.mxu0 0.0
        %1572 = vmatprep.mubr.f32.mxu0 0.0
        %1573 = vmatmul.mubr.f32.gmra.mrb[0].mxu0 %v1503
        %v1574 = vpop.f32.mrb[0].mxu0
        %v1575 = vadd.f32 0.0, %v1574
        %v1576 = vpop.f32.mrb[0].mxu0
        %1577 = vmatprep.mubr.f32.mxu0 0.0
        %1578 = vmatmul.mubr.f32.gmra.mrb[0].mxu0 %v1506
        %v1579 = vpop.f32.mrb[0].mxu0
        %v1580 = vadd.f32 0.0, %v1579
        %v1581 = vpop.f32.mrb[0].mxu0
        %1582 = vdwg.mxu0
        %v1583 = vld [vmem:[#allocation8 + $0x18] sm:$0xff]
        %v1585 = vsel %vm497, %v1575, 0
        %v1588 = vsel %vm497, %v1580, 0
        %1590 = vmatprep.subr.mxu0 0.0
        %1591 = vmatpush1.msra.mxu0 %v1583
        %1592 = vmatprep.subr.mxu0 0.0
        %1593 = vmatpush1.msra.mxu0 0.0
        %1594 = vmatprep.subr.mxu0 0.0
        %1595 = vmatpush1.msra.mxu0 0.0
        %1596 = vmatprep.subr.mxu0 0.0
        %1597 = vmatpush1.msra.mxu0 0.0
        %1598 = vmatprep.subr.mxu0 0.0
        %1599 = vmatpush1.msra.mxu0 0.0
        %1600 = vmatprep.subr.mxu0 0.0
        %1601 = vmatpush1.msra.mxu0 0.0
        %1602 = vmatprep.subr.mxu0 0.0
        %1603 = vmatpush1.msra.mxu0 0.0
        %1604 = vmatprep.subr.mxu0 0.0
        %1605 = vmatpush1.msra.mxu0 0.0
        %1606 = vmatprep.subr.mxu0 0.0
        %1607 = vmatpush1.msra.mxu0 0.0
        %1608 = vmatprep.subr.mxu0 0.0
        %1609 = vmatpush1.msra.mxu0 0.0
        %1610 = vmatprep.subr.mxu0 0.0
        %1611 = vmatpush1.msra.mxu0 0.0
        %1612 = vmatprep.subr.mxu0 0.0
        %1613 = vmatpush1.msra.mxu0 0.0
        %1614 = vmatprep.subr.mxu0 0.0
        %1615 = vmatpush1.msra.mxu0 0.0
        %1616 = vmatprep.subr.mxu0 0.0
        %1617 = vmatpush1.msra.mxu0 0.0
        %1618 = vmatprep.subr.mxu0 0.0
        %1619 = vmatpush1.msra.mxu0 0.0
        %1620 = vmatprep.subr.mxu0 0.0
        %1621 = vmatpush1.msra.mxu0 0.0
        %1622 = vmatprep.subr.mxu0 0.0
        %1623 = vmatpush1.msra.mxu0 0.0
        %1624 = vmatprep.subr.mxu0 0.0
        %1625 = vmatpush1.msra.mxu0 0.0
        %1626 = vmatprep.subr.mxu0 0.0
        %1627 = vmatpush1.msra.mxu0 0.0
        %1628 = vmatprep.subr.mxu0 0.0
        %1629 = vmatpush1.msra.mxu0 0.0
        %1630 = vmatprep.subr.mxu0 0.0
        %1631 = vmatpush1.msra.mxu0 0.0
        %1632 = vmatprep.subr.mxu0 0.0
        %1633 = vmatpush1.msra.mxu0 0.0
        %1634 = vmatprep.subr.mxu0 0.0
        %1635 = vmatpush1.msra.mxu0 0.0
        %1636 = vmatprep.subr.mxu0 0.0
        %1637 = vmatpush1.msra.mxu0 0.0
        %1638 = vmatprep.subr.mxu0 0.0
        %1639 = vmatpush1.msra.mxu0 0.0
        %1640 = vmatprep.subr.mxu0 0.0
        %1641 = vmatpush1.msra.mxu0 0.0
        %1642 = vmatprep.subr.mxu0 0.0
        %1643 = vmatpush1.msra.mxu0 0.0
        %1644 = vmatprep.subr.mxu0 0.0
        %1645 = vmatpush1.msra.mxu0 0.0
        %1646 = vmatprep.subr.mxu0 0.0
        %1647 = vmatpush1.msra.mxu0 0.0
        %1648 = vmatprep.subr.mxu0 0.0
        %1649 = vmatpush1.msra.mxu0 0.0
        %1650 = vmatprep.subr.mxu0 0.0
        %1651 = vmatpush1.msra.mxu0 0.0
        %1652 = vmatprep.subr.mxu0 0.0
        %1653 = vmatpush1.msra.mxu0 0.0
        %1654 = vmatprep.mubr.f32.mxu0 0.0
        %1655 = vmatmul.mubr.f32.gmra.mrb[0].mxu0 %v1585
        %v1656 = vpop.f32.mrb[0].mxu0
        %v1657 = vadd.f32 0.0, %v1656
        %v1658 = vpop.f32.mrb[0].mxu0
        %1659 = vmatprep.mubr.f32.mxu0 0.0
        %1660 = vmatmul.mubr.f32.gmra.mrb[0].mxu0 %v1588
        %v1661 = vpop.f32.mrb[0].mxu0
        %v1662 = vadd.f32 0.0, %v1661
        %v1663 = vpop.f32.mrb[0].mxu0
        %1664 = vdwg.mxu0
        %v1665 = vadd.f32 %v1371, %v1657
        %v1666 = vadd.f32 %v1372, %v1662
        %v1667 = vld [vmem:[%s6 + $0x3] sm:$0x1]
        %v1668 = vlaneseq
        %v1669 = vshrl.u32 %v1668, 7
        %v1670 = vsub.s32 0, %v1669
        %v1671 = vrot.slane %v1667, %v1670
        %v1672 = vadd.f32 %v1665, %v1671
        %v1673 = vadd.f32 %v1666, %v1671
        %v1674 = vadd.f32 %v372, %v1672
        %v1675 = vadd.f32 %v373, %v1673
        %v1676 = vld [vmem:[%s6 + $0x4] sm:$0x1]
        %v1677 = vld [vmem:[%s6 + $0x5] sm:$0x1]
        %v1678 = vsel %vm378, %v1674, 0.0
        %1679 = vadd.xlane.f32.xlu0 %v1678
        %v1680 = vpop.xlane.xlu0 %1679
        %v1681 = vsel %vm378, %v1675, 0.0
        %1682 = vadd.xlane.f32.xlu0 %v1681
        %v1683 = vpop.xlane.xlu0 %1682
        %v1684 = vrcp.pop 32.0
        %v1685 = vmul.f32 %v1680, %v1684
        %v1686 = vmul.f32 %v1683, %v1684
        %v1687 = vsub.f32 %v1674, %v1685
        %v1688 = vsub.f32 %v1675, %v1686
        %v1689 = vmul.f32 %v1687, %v1687
        %v1690 = vmul.f32 %v1688, %v1688
        %v1691 = vsel %vm378, %v1689, 0.0
        %1692 = vadd.xlane.f32.xlu0 %v1691
        %v1693 = vpop.xlane.xlu0 %1692
        %v1694 = vsel %vm378, %v1690, 0.0
        %1695 = vadd.xlane.f32.xlu0 %v1694
        %v1696 = vpop.xlane.xlu0 %1695
        %v1697 = vmul.f32 %v1693, %v1684
        %v1698 = vmul.f32 %v1696, %v1684
        %v1699 = vadd.f32 %v1697, 1e-05
        %v1700 = vadd.f32 %v1698, 1e-05
        %v1701 = vrsqrt.pop %v1699
        %v1702 = vrsqrt.pop %v1700
        %v1703 = vmul.f32 %v1687, %v1701
        %v1704 = vmul.f32 %v1688, %v1702
        %v1705 = vlaneseq
        %v1706 = vshrl.u32 %v1705, 7
        %v1707 = vsub.s32 0, %v1706
        %v1708 = vrot.slane %v1676, %v1707
        %v1709 = vmul.f32 %v1703, %v1708
        %v1710 = vmul.f32 %v1704, %v1708
        %v1711 = vlaneseq
        %v1712 = vshrl.u32 %v1711, 7
        %v1713 = vsub.s32 0, %v1712
        %v1714 = vrot.slane %v1677, %v1713
        %v1715 = vadd.f32 %v1709, %v1714
        %v1716 = vadd.f32 %v1710, %v1714
        %v1717 = vld [vmem:[#allocation10] sm:$0xff]
        %v1718 = vld [vmem:[#allocation10 + $0x8] sm:$0xff]
        %v1719 = vld [vmem:[#allocation10 + $0x10] sm:$0xff]
        %v1720 = vld [vmem:[#allocation10 + $0x18] sm:$0xff]
        %v1721 = vld [vmem:[%s6 + $0x6] sm:$0x1]
        %v1722 = vlaneseq
        %v1723 = vshrl.u32 %v1722, 7
        %v1724 = vsub.s32 0, %v1723
        %v1725 = vrot.slane %v1721, %v1724
        %v1727 = vsel %vm378, %v1715, 0
        %v1730 = vsel %vm378, %v1716, 0
        %1732 = vmatprep.subr.mxu0 0.0
        %1733 = vmatpush1.msra.mxu0 %v1717
        %1734 = vmatprep.subr.mxu0 0.0
        %1735 = vmatpush1.msra.mxu0 %v1718
        %1736 = vmatprep.subr.mxu0 0.0
        %1737 = vmatpush1.msra.mxu0 %v1719
        %1738 = vmatprep.subr.mxu0 0.0
        %1739 = vmatpush1.msra.mxu0 %v1720
        %1740 = vmatprep.subr.mxu0 0.0
        %1741 = vmatpush1.msra.mxu0 0.0
        %1742 = vmatprep.subr.mxu0 0.0
        %1743 = vmatpush1.msra.mxu0 0.0
        %1744 = vmatprep.subr.mxu0 0.0
        %1745 = vmatpush1.msra.mxu0 0.0
        %1746 = vmatprep.subr.mxu0 0.0
        %1747 = vmatpush1.msra.mxu0 0.0
        %1748 = vmatprep.subr.mxu0 0.0
        %1749 = vmatpush1.msra.mxu0 0.0
        %1750 = vmatprep.subr.mxu0 0.0
        %1751 = vmatpush1.msra.mxu0 0.0
        %1752 = vmatprep.subr.mxu0 0.0
        %1753 = vmatpush1.msra.mxu0 0.0
        %1754 = vmatprep.subr.mxu0 0.0
        %1755 = vmatpush1.msra.mxu0 0.0
        %1756 = vmatprep.subr.mxu0 0.0
        %1757 = vmatpush1.msra.mxu0 0.0
        %1758 = vmatprep.subr.mxu0 0.0
        %1759 = vmatpush1.msra.mxu0 0.0
        %1760 = vmatprep.subr.mxu0 0.0
        %1761 = vmatpush1.msra.mxu0 0.0
        %1762 = vmatprep.subr.mxu0 0.0
        %1763 = vmatpush1.msra.mxu0 0.0
        %1764 = vmatprep.subr.mxu0 0.0
        %1765 = vmatpush1.msra.mxu0 0.0
        %1766 = vmatprep.subr.mxu0 0.0
        %1767 = vmatpush1.msra.mxu0 0.0
        %1768 = vmatprep.subr.mxu0 0.0
        %1769 = vmatpush1.msra.mxu0 0.0
        %1770 = vmatprep.subr.mxu0 0.0
        %1771 = vmatpush1.msra.mxu0 0.0
        %1772 = vmatprep.subr.mxu0 0.0
        %1773 = vmatpush1.msra.mxu0 0.0
        %1774 = vmatprep.subr.mxu0 0.0
        %1775 = vmatpush1.msra.mxu0 0.0
        %1776 = vmatprep.subr.mxu0 0.0
        %1777 = vmatpush1.msra.mxu0 0.0
        %1778 = vmatprep.subr.mxu0 0.0
        %1779 = vmatpush1.msra.mxu0 0.0
        %1780 = vmatprep.subr.mxu0 0.0
        %1781 = vmatpush1.msra.mxu0 0.0
        %1782 = vmatprep.subr.mxu0 0.0
        %1783 = vmatpush1.msra.mxu0 0.0
        %1784 = vmatprep.subr.mxu0 0.0
        %1785 = vmatpush1.msra.mxu0 0.0
        %1786 = vmatprep.subr.mxu0 0.0
        %1787 = vmatpush1.msra.mxu0 0.0
        %1788 = vmatprep.subr.mxu0 0.0
        %1789 = vmatpush1.msra.mxu0 0.0
        %1790 = vmatprep.subr.mxu0 0.0
        %1791 = vmatpush1.msra.mxu0 0.0
        %1792 = vmatprep.subr.mxu0 0.0
        %1793 = vmatpush1.msra.mxu0 0.0
        %1794 = vmatprep.subr.mxu0 0.0
        %1795 = vmatpush1.msra.mxu0 0.0
        %1796 = vmatprep.mubr.f32.mxu0 0.0
        %1797 = vmatmul.mubr.f32.gmra.mrb[0].mxu0 %v1727
        %v1798 = vpop.f32.mrb[0].mxu0
        %v1799 = vadd.f32 %v1725, %v1798
        %v1800 = vpop.f32.mrb[0].mxu0
        %1801 = vmatprep.mubr.f32.mxu0 0.0
        %1802 = vmatmul.mubr.f32.gmra.mrb[0].mxu0 %v1730
        %v1803 = vpop.f32.mrb[0].mxu0
        %v1804 = vadd.f32 %v1725, %v1803
        %v1805 = vpop.f32.mrb[0].mxu0
        %1806 = vdwg.mxu0
        %v1807 = vmax.f32 %v1799, 0.0
        %v1808 = vmax.f32 %v1804, 0.0
        %v1809 = vld [vmem:[#allocation11] sm:$0xff]
        %v1810 = vld [vmem:[#allocation11 + $0x8] sm:$0xff]
        %v1811 = vld [vmem:[#allocation11 + $0x10] sm:$0xff]
        %v1812 = vld [vmem:[#allocation11 + $0x18] sm:$0xff]
        %v1813 = vld [vmem:[%s6 + $0x7] sm:$0x1]
        %v1814 = vlaneseq
        %v1815 = vshrl.u32 %v1814, 7
        %v1816 = vsub.s32 0, %v1815
        %v1817 = vrot.slane %v1813, %v1816
        %v1819 = vsel %vm378, %v1807, 0
        %v1822 = vsel %vm378, %v1808, 0
        %1824 = vmatprep.subr.mxu0 0.0
        %1825 = vmatpush1.msra.mxu0 %v1809
        %1826 = vmatprep.subr.mxu0 0.0
        %1827 = vmatpush1.msra.mxu0 %v1810
        %1828 = vmatprep.subr.mxu0 0.0
        %1829 = vmatpush1.msra.mxu0 %v1811
        %1830 = vmatprep.subr.mxu0 0.0
        %1831 = vmatpush1.msra.mxu0 %v1812
        %1832 = vmatprep.subr.mxu0 0.0
        %1833 = vmatpush1.msra.mxu0 0.0
        %1834 = vmatprep.subr.mxu0 0.0
        %1835 = vmatpush1.msra.mxu0 0.0
        %1836 = vmatprep.subr.mxu0 0.0
        %1837 = vmatpush1.msra.mxu0 0.0
        %1838 = vmatprep.subr.mxu0 0.0
        %1839 = vmatpush1.msra.mxu0 0.0
        %1840 = vmatprep.subr.mxu0 0.0
        %1841 = vmatpush1.msra.mxu0 0.0
        %1842 = vmatprep.subr.mxu0 0.0
        %1843 = vmatpush1.msra.mxu0 0.0
        %1844 = vmatprep.subr.mxu0 0.0
        %1845 = vmatpush1.msra.mxu0 0.0
        %1846 = vmatprep.subr.mxu0 0.0
        %1847 = vmatpush1.msra.mxu0 0.0
        %1848 = vmatprep.subr.mxu0 0.0
        %1849 = vmatpush1.msra.mxu0 0.0
        %1850 = vmatprep.subr.mxu0 0.0
        %1851 = vmatpush1.msra.mxu0 0.0
        %1852 = vmatprep.subr.mxu0 0.0
        %1853 = vmatpush1.msra.mxu0 0.0
        %1854 = vmatprep.subr.mxu0 0.0
        %1855 = vmatpush1.msra.mxu0 0.0
        %1856 = vmatprep.subr.mxu0 0.0
        %1857 = vmatpush1.msra.mxu0 0.0
        %1858 = vmatprep.subr.mxu0 0.0
        %1859 = vmatpush1.msra.mxu0 0.0
        %1860 = vmatprep.subr.mxu0 0.0
        %1861 = vmatpush1.msra.mxu0 0.0
        %1862 = vmatprep.subr.mxu0 0.0
        %1863 = vmatpush1.msra.mxu0 0.0
        %1864 = vmatprep.subr.mxu0 0.0
        %1865 = vmatpush1.msra.mxu0 0.0
        %1866 = vmatprep.subr.mxu0 0.0
        %1867 = vmatpush1.msra.mxu0 0.0
        %1868 = vmatprep.subr.mxu0 0.0
        %1869 = vmatpush1.msra.mxu0 0.0
        %1870 = vmatprep.subr.mxu0 0.0
        %1871 = vmatpush1.msra.mxu0 0.0
        %1872 = vmatprep.subr.mxu0 0.0
        %1873 = vmatpush1.msra.mxu0 0.0
        %1874 = vmatprep.subr.mxu0 0.0
        %1875 = vmatpush1.msra.mxu0 0.0
        %1876 = vmatprep.subr.mxu0 0.0
        %1877 = vmatpush1.msra.mxu0 0.0
        %1878 = vmatprep.subr.mxu0 0.0
        %1879 = vmatpush1.msra.mxu0 0.0
        %1880 = vmatprep.subr.mxu0 0.0
        %1881 = vmatpush1.msra.mxu0 0.0
        %1882 = vmatprep.subr.mxu0 0.0
        %1883 = vmatpush1.msra.mxu0 0.0
        %1884 = vmatprep.subr.mxu0 0.0
        %1885 = vmatpush1.msra.mxu0 0.0
        %1886 = vmatprep.subr.mxu0 0.0
        %1887 = vmatpush1.msra.mxu0 0.0
        %1888 = vmatprep.mubr.f32.mxu0 0.0
        %1889 = vmatmul.mubr.f32.gmra.mrb[0].mxu0 %v1819
        %v1890 = vpop.f32.mrb[0].mxu0
        %v1891 = vadd.f32 %v1817, %v1890
        %v1892 = vpop.f32.mrb[0].mxu0
        %1893 = vmatprep.mubr.f32.mxu0 0.0
        %1894 = vmatmul.mubr.f32.gmra.mrb[0].mxu0 %v1822
        %v1895 = vpop.f32.mrb[0].mxu0
        %v1896 = vadd.f32 %v1817, %v1895
        %v1897 = vpop.f32.mrb[0].mxu0
        %1898 = vdwg.mxu0
        %v1899 = vadd.f32 %v1715, %v1891
        %v1900 = vadd.f32 %v1716, %v1896
        %v1901 = vld [vmem:[%s6 + $0x8] sm:$0x1]
        %v1902 = vld [vmem:[%s6 + $0x9] sm:$0x1]
        %v1903 = vsel %vm378, %v1899, 0.0
        %1904 = vadd.xlane.f32.xlu0 %v1903
        %v1905 = vpop.xlane.xlu0 %1904
        %v1906 = vsel %vm378, %v1900, 0.0
        %1907 = vadd.xlane.f32.xlu0 %v1906
        %v1908 = vpop.xlane.xlu0 %1907
        %v1909 = vmul.f32 %v1905, %v1684
        %v1910 = vmul.f32 %v1908, %v1684
        %v1911 = vsub.f32 %v1899, %v1909
        %v1912 = vsub.f32 %v1900, %v1910
        %v1913 = vmul.f32 %v1911, %v1911
        %v1914 = vmul.f32 %v1912, %v1912
        %v1915 = vsel %vm378, %v1913, 0.0
        %1916 = vadd.xlane.f32.xlu0 %v1915
        %v1917 = vpop.xlane.xlu0 %1916
        %v1918 = vsel %vm378, %v1914, 0.0
        %1919 = vadd.xlane.f32.xlu0 %v1918
        %v1920 = vpop.xlane.xlu0 %1919
        %v1921 = vmul.f32 %v1917, %v1684
        %v1922 = vmul.f32 %v1920, %v1684
        %v1923 = vadd.f32 %v1921, 1e-05
        %v1924 = vadd.f32 %v1922, 1e-05
        %v1925 = vrsqrt.pop %v1923
        %v1926 = vrsqrt.pop %v1924
        %v1927 = vmul.f32 %v1911, %v1925
        %v1928 = vmul.f32 %v1912, %v1926
        %v1929 = vlaneseq
        %v1930 = vshrl.u32 %v1929, 7
        %v1931 = vsub.s32 0, %v1930
        %v1932 = vrot.slane %v1901, %v1931
        %v1933 = vmul.f32 %v1927, %v1932
        %v1934 = vmul.f32 %v1928, %v1932
        %v1935 = vlaneseq
        %v1936 = vshrl.u32 %v1935, 7
        %v1937 = vsub.s32 0, %v1936
        %v1938 = vrot.slane %v1902, %v1937
        %v1939 = vadd.f32 %v1933, %v1938
        %v1940 = vadd.f32 %v1934, %v1938
        %1941 = vst.msk [vmem:[%s369] sm:$0xff] %vm378, %v1939
        %1942 = vst.msk [vmem:[%s369 + $0x8] sm:$0xff] %vm378, %v1940
        %s1943 = sand.u32 %s187, 1
        %s1944 = scalar_lea.sflag [#allocation4], %s1943
        %s1945 = sand.u32 %s187, 1
        %s1946 = smul.addr %s1945, 16
        %s1947 = scalar_lea.vmem [#allocation13], %s1946
        // Predicated region
        $region73: #{tpu_custom_call.1} parent=47 // pred_check
          %p1948 = pneg %p197
        $region74: #{tpu_custom_call.1} parent=47 // pred_check_branch
          %1950 = sbr.rel (%p1948) target = $region76
        $region75: #{tpu_custom_call.1} parent=47 // pred_region
          %s1951 = smul.u32 2, %s27
          %s1953 = ssub.s32 256, 256
          %1954 = vsyncadd %s1944, %s1953
          %s1955 = smul.addr %s1951, 128
          %s1956 = scalar_lea.hbm %s7, %s1955
          %s1957 = sshll.u32 %s1947, 4
          %s1958 = int_to_ptr.vmem [resolvable:$true] %s1957
          %1963 = dma.vmem_to_hbm [thread:$0]  %s1958, 256, %s1956, %s1944, 128, 128, 8
        $region76: #{tpu_custom_call.1} parent=47 // pred_fallthru
          _
      $region48: #{tpu_custom_call.1} parent=5 // pred_fallthru
        _
      %p1964 = scmp.le.s32.totalorder 2, %s22
      // Predicated region
      $region77: #{tpu_custom_call.1} parent=5 // pred_check
        %p1965 = pneg %p1964
      $region78: #{tpu_custom_call.1} parent=5 // pred_check_branch
        %1967 = sbr.rel (%p1965) target = $region80
      $region79: #{tpu_custom_call.1} parent=5 // pred_region
        %s1968 = ssub.s32 %s22, 2
        // Predicated region
        $region81: #{tpu_custom_call.1} parent=79 // pred_check
          %p1969 = pneg %p203
        $region82: #{tpu_custom_call.1} parent=79 // pred_check_branch
          %1971 = sbr.rel (%p1969) target = $region84
        $region83: #{tpu_custom_call.1} parent=79 // pred_region
          %s1972 = sand.u32 %s188, 1
          %s1973 = scalar_lea.sflag [#allocation4], %s1972
          %s1974 = sand.u32 %s188, 1
          %s1975 = smul.addr %s1974, 16
          %s1976 = scalar_lea.vmem [#allocation13], %s1975
          %1977 = dma.done %s1973, 256
        $region84: #{tpu_custom_call.1} parent=79 // pred_fallthru
          _
      $region80: #{tpu_custom_call.1} parent=5 // pred_fallthru
        _
    $region6: #{tpu_custom_call.1} parent=1 // loop_footer
      %s26 = sadd.s32 1, %s22
    $region7: #{tpu_custom_call.1} parent=1 // loop_footer_branch
      %21 = sbr.rel target = $region3
    $region8: #{tpu_custom_call.1} parent=1 // loop_exit
      _
    %1978 = vsyncpa [#allocation3], 1
    %s1979 = scalar_lea.sflag [#allocation3], 1
    %1980 = vsyncpa %s1979, 1
    %1981 = vsyncpa [#allocation6], 1
    %1982 = vsyncpa [#allocation9], 1
    %1983 = vsyncpa [#allocation12], 1
    %1984 = vsyncpa [#allocation4], 1
    %s1985 = scalar_lea.sflag [#allocation4], 1
    %1986 = vsyncpa %s1985, 1

</llo_original>
